<compile_context>
chip_gen: v5e
topology: v5e:2x2
jax: 0.10.0
libtpu: 0.0.40
codegen_flags: <defaults>
</compile_context>

<pallas_src>
import functools
import math

import jax
import jax.numpy as jnp
from jax.experimental import pallas as pl
from jax.experimental.pallas import tpu as pltpu


# ------------------------------ Pallas kernels ------------------------------

def _apply_act(y, act):
    """Mirror of `getattr(F, act)` for the activations the module uses."""
    if act is None or act == "identity":
        return y
    if act == "relu":
        return jnp.maximum(y, 0.0)
    if act == "silu":
        return y * jax.nn.sigmoid(y)
    if act == "sigmoid":
        return jax.nn.sigmoid(y)
    if act == "gelu":
        return jax.nn.gelu(y)
    if act == "tanh":
        return jnp.tanh(y)
    raise NotImplementedError(f"activation {act!r} not supported")


def _dense_conv_kernel(x_ref, w_ref, shift_ref, o_ref, *, k, wp, m_out, act):
    """kxk conv (BN scale pre-folded) + shift + act as k*k shifted matmuls.

    x_ref:     (1, L_flat, Cin)  padded NHWC image, spatial dims flattened
    w_ref:     (k*k, Cin, Cout)  tap-major weights, BN scale folded in
    shift_ref: (1, Cout)         conv bias + BN shift folded together
    o_ref:     (1, m_out, Cout)  m_out = H * Wp (junk border cols cropped later)
    """
    cout = o_ref.shape[-1]
    acc = jnp.zeros((m_out, cout), jnp.float32)
    for dy in range(k):                       # unrolled: k*k static tap shifts
        for dx in range(k):
            off = dy * wp + dx                # static flat offset of this tap
            xs = x_ref[0, off:off + m_out, :]             # (m_out, Cin) window
            acc += jnp.dot(xs, w_ref[dy * k + dx],
                           preferred_element_type=jnp.float32)
    o_ref[0] = _apply_act(acc + shift_ref[...], act)


def _depthwise_conv_kernel(x_ref, w_ref, shift_ref, o_ref, *, k, wp, m_out, act):
    """Depthwise kxk conv + folded BN + act as unrolled per-tap VPU FMAs.

    x_ref: (1, L_flat, C)   w_ref: (k*k, C)   shift_ref: (1, C)   o_ref: (1, m_out, C)
    """
    c = o_ref.shape[-1]
    acc = jnp.zeros((m_out, c), jnp.float32)
    for dy in range(k):
        for dx in range(k):
            off = dy * wp + dx
            tap = dy * k + dx
            acc += x_ref[0, off:off + m_out, :] * w_ref[tap:tap + 1, :]
    o_ref[0] = _apply_act(acc + shift_ref[...], act)


# ------------------------------- forward pass --------------------------------

def conv_norm_layer(x_nchw, params):
    """ConvNormLayer.forward: conv2d(+bias) -> BatchNorm2d(eval) -> act.

    Takes / returns NCHW (PyTorch convention); internally NHWC with the padded
    spatial plane flattened so the conv is done with in-kernel tap shifting.
    """
    k = params["k"]
    stride = params["stride"]
    act = params["act"]
    depthwise = params["depthwise"]
    w = params["w"]
    shift = params["shift"]
    cout = shift.shape[-1]

    n, cin, h, wdt = x_nchw.shape
    pad = (k - 1) // 2
    hp, wp = h + 2 * pad, wdt + 2 * pad
    m_out = h * wp                      # compute Wp cols per row, crop W later

    x = jnp.transpose(x_nchw, (0, 2, 3, 1)).astype(jnp.float32)        # NHWC
    xp = jnp.pad(x, ((0, 0), (pad, pad), (pad, pad), (0, 0)))
    xf = xp.reshape(n, hp * wp, cin)
    if k > 1:
        # tail halo so the last tap of the last row never reads out of bounds
        xf = jnp.pad(xf, ((0, 0), (0, k - 1), (0, 0)))
    l_flat = xf.shape[1]

    kern = functools.partial(
        _depthwise_conv_kernel if depthwise else _dense_conv_kernel,
        k=k, wp=wp, m_out=m_out, act=act)

    out_flat = pl.pallas_call(
        kern,
        out_shape=jax.ShapeDtypeStruct((n, m_out, cout), jnp.float32),
        grid=(n,),                                     # one full image per step
        in_specs=[
            pl.BlockSpec((1, l_flat, cin), lambda i: (i, 0, 0)),
            pl.BlockSpec(w.shape, lambda i: (0,) * w.ndim),
            pl.BlockSpec((1, cout), lambda i: (0, 0)),
        ],
        out_specs=pl.BlockSpec((1, m_out, cout), lambda i: (i, 0, 0)),
        compiler_params=pltpu.CompilerParams(
            dimension_semantics=("parallel",)),
    )(xf, w, shift)

    out = out_flat.reshape(n, h, wp, cout)[:, :, :wdt, :]   # drop junk columns
    if stride > 1:
        # TODO(synk): stride>1 is exact but computed as the stride-1 conv then
        # subsampled (s^2 x extra work); fine at these small shapes.
        out = out[:, ::stride, ::stride, :]
    return jnp.transpose(out, (0, 3, 1, 2))                 # back to NCHW


# ------------------------- deterministic parameters --------------------------

def make_conv_norm_params(key, ch_in, ch_out, filter_size, stride,
                          groups=1, act=None, eps=1e-5):
    """Build Conv2d(+bias) + BatchNorm2d(eval) params, BN folded for the kernel."""
    assert filter_size % 2 == 1, "even filter_size not supported"  # TODO(synk)
    assert ch_in % groups == 0 and ch_out % groups == 0
    k = filter_size
    cig = ch_in // groups
    keys = jax.random.split(key, 6)

    # torch-layout conv weight (Cout, Cin/groups, k, k); Conv2d default bias=True
    w_t = (jax.random.normal(keys[0], (ch_out, cig, k, k), jnp.float32)
           / math.sqrt(cig * k * k))
    b_t = 0.1 * jax.random.normal(keys[1], (ch_out,), jnp.float32)
    # BatchNorm2d running stats / affine params (inference mode)
    gamma = 1.0 + 0.1 * jax.random.normal(keys[2], (ch_out,), jnp.float32)
    beta = 0.1 * jax.random.normal(keys[3], (ch_out,), jnp.float32)
    mean = 0.1 * jax.random.normal(keys[4], (ch_out,), jnp.float32)
    var = 1.0 + jnp.square(0.3 * jax.random.normal(keys[5], (ch_out,), jnp.float32))

    scale = gamma / jnp.sqrt(var + eps)          # BN scale -> folded into W
    shift = (b_t - mean) * scale + beta          # conv bias + BN shift -> folded
    w_s = w_t * scale[:, None, None, None]

    depthwise = (groups == ch_in) and (groups == ch_out)
    if depthwise:
        # (C, 1, k, k) -> (k*k, C), tap index = kh*k + kw
        w_k = jnp.transpose(w_s.reshape(ch_out, k * k), (1, 0))
    else:
        # (Cout, Cig, k, k) -> (k*k, Cig, Cout), tap index = kh*k + kw
        w_r = jnp.transpose(w_s, (2, 3, 1, 0)).reshape(k * k, cig, ch_out)
        if groups == 1:
            w_k = w_r
        else:
            # exact block-diagonal expansion for grouped (non-depthwise) convs
            cog = ch_out // groups
            w_k = jnp.zeros((k * k, ch_in, ch_out), jnp.float32)
            for g in range(groups):
                w_k = w_k.at[:, g * cig:(g + 1) * cig,
                             g * cog:(g + 1) * cog].set(
                                 w_r[:, :, g * cog:(g + 1) * cog])

    return dict(
        w=w_k, shift=shift.reshape(1, ch_out), k=k, stride=stride, act=act,
        depthwise=depthwise,
        # raw (unfolded) tensors kept for the pure-JAX reference check
        raw=dict(w=w_t, b=b_t, gamma=gamma, beta=beta, mean=mean, var=var,
                 groups=groups, eps=eps))


# ----------------------------- pure-JAX reference ----------------------------

def conv_norm_layer_reference(x_nchw, params):
    r = params["raw"]
    k, s, act = params["k"], params["stride"], params["act"]
    pad = (k - 1) // 2
    y = jax.lax.conv_general_dilated(
        x_nchw.astype(jnp.float32), r["w"], window_strides=(s, s),
        padding=((pad, pad), (pad, pad)),
        dimension_numbers=("NCHW", "OIHW", "NCHW"),
        feature_group_count=r["groups"])
    y = y + r["b"][None, :, None, None]
    y = (y - r["mean"][None, :, None, None]) / jnp.sqrt(
        r["var"][None, :, None, None] + r["eps"])
    y = y * r["gamma"][None, :, None, None] + r["beta"][None, :, None, None]
    return _apply_act(y, act)


# ------------------------------------ main ------------------------------------

if __name__ == "__main__":
    root = jax.random.PRNGKey(0)
    kx, k1, k2, k3 = jax.random.split(root, 4)

    N, C_IN, H, W = 2, 8, 16, 16
    x = jax.random.normal(kx, (N, C_IN, H, W), jnp.float32)

    # (name, ch_out, filter_size, stride, groups, act, key) — covers the ways
    # MSBlock.py instantiates ConvNormLayer (1x1 / 3x3, dense / depthwise).
    cases = [
        ("3x3_dense_relu",            16,   3, 1, 1,    "relu", k1),
        ("3x3_depthwise_silu",        C_IN, 3, 1, C_IN, "silu", k2),
        ("1x1_grouped_stride2_noact", 16,   1, 2, 2,    None,   k3),
    ]

    for name, ch_out, fs, st, gr, act, kk in cases:
        p = make_conv_norm_params(kk, C_IN, ch_out, fs, st, groups=gr, act=act)
        fwd = jax.jit(lambda inp, pp=p: conv_norm_layer(inp, pp))
        y = jax.block_until_ready(fwd(x))
        y_ref = conv_norm_layer_reference(x, p)

        h_out = (H + 2 * ((fs - 1) // 2) - fs) // st + 1
        assert y.shape == (N, ch_out, h_out, h_out), (name, y.shape)
        assert bool(jnp.all(jnp.isfinite(y))), name
        assert bool(jnp.allclose(y, y_ref, atol=1e-3, rtol=1e-3)), (
            name, float(jnp.max(jnp.abs(y - y_ref))))

    print("KERNEL_OK")
</pallas_src>

<mosaic_0001>
module attributes {stable_mosaic.version = 11 : i64} {
  func.func @_dense_conv_kernel(%arg0: i32, %arg1: memref<1x326x8xf32, #tpu.memory_space<vmem>>, %arg2: memref<9x8x16xf32, #tpu.memory_space<vmem>>, %arg3: memref<1x16xf32, #tpu.memory_space<vmem>>, %arg4: memref<1x288x16xf32, #tpu.memory_space<vmem>>) attributes {dimension_semantics = [#tpu.dimension_semantics<parallel>], iteration_bounds = array<i64: 2>, scalar_prefetch = 0 : i64, scratch_operands = 0 : i64, tpu.core_type = #tpu.core_type<tc>, window_params = [{transform_indices = @transform_0, window_bounds = array<i64: 1, 326, 8>}, {pipeline_mode = #tpu.pipeline_mode<synchronous>, transform_indices = @transform_1, window_bounds = array<i64: 9, 8, 16>}, {pipeline_mode = #tpu.pipeline_mode<synchronous>, transform_indices = @transform_2, window_bounds = array<i64: 1, 16>}, {transform_indices = @transform_3, window_bounds = array<i64: 1, 288, 16>}]} {
    %cst = arith.constant 0.000000e+00 : f32
    %0 = vector.broadcast %cst : f32 to vector<288x16xf32>
    %c0 = arith.constant 0 : index
    %c0_0 = arith.constant 0 : index
    %c0_1 = arith.constant 0 : index
    %1 = vector.load %arg1[%c0, %c0_0, %c0_1] : memref<1x326x8xf32, #tpu.memory_space<vmem>>, vector<1x288x8xf32>
    %2 = vector.shape_cast %1 : vector<1x288x8xf32> to vector<288x8xf32>
    %c0_2 = arith.constant 0 : index
    %c0_3 = arith.constant 0 : index
    %c0_4 = arith.constant 0 : index
    %3 = vector.load %arg2[%c0_2, %c0_3, %c0_4] : memref<9x8x16xf32, #tpu.memory_space<vmem>>, vector<1x8x16xf32>
    %4 = vector.shape_cast %3 : vector<1x8x16xf32> to vector<8x16xf32>
    %cst_5 = arith.constant dense<0.000000e+00> : vector<288x16xf32>
    %5 = tpu.matmul %2, %4, %cst_5 {dimension_numbers = #tpu.dot_dimension_numbers<[1], [0], [0], [1], [0, 0, 1, 1], [], []>} : vector<288x8xf32>, vector<8x16xf32>, vector<288x16xf32> -> vector<288x16xf32>
    %6 = arith.addf %0, %5 : vector<288x16xf32>
    %c0_6 = arith.constant 0 : index
    %c1 = arith.constant 1 : index
    %c0_7 = arith.constant 0 : index
    %7 = vector.load %arg1[%c0_6, %c1, %c0_7] : memref<1x326x8xf32, #tpu.memory_space<vmem>>, vector<1x288x8xf32>
    %8 = vector.shape_cast %7 : vector<1x288x8xf32> to vector<288x8xf32>
    %c1_8 = arith.constant 1 : index
    %c0_9 = arith.constant 0 : index
    %c0_10 = arith.constant 0 : index
    %9 = vector.load %arg2[%c1_8, %c0_9, %c0_10] : memref<9x8x16xf32, #tpu.memory_space<vmem>>, vector<1x8x16xf32>
    %10 = vector.shape_cast %9 : vector<1x8x16xf32> to vector<8x16xf32>
    %cst_11 = arith.constant dense<0.000000e+00> : vector<288x16xf32>
    %11 = tpu.matmul %8, %10, %cst_11 {dimension_numbers = #tpu.dot_dimension_numbers<[1], [0], [0], [1], [0, 0, 1, 1], [], []>} : vector<288x8xf32>, vector<8x16xf32>, vector<288x16xf32> -> vector<288x16xf32>
    %12 = arith.addf %6, %11 : vector<288x16xf32>
    %c0_12 = arith.constant 0 : index
    %c2 = arith.constant 2 : index
    %c0_13 = arith.constant 0 : index
    %13 = vector.load %arg1[%c0_12, %c2, %c0_13] : memref<1x326x8xf32, #tpu.memory_space<vmem>>, vector<1x288x8xf32>
    %14 = vector.shape_cast %13 : vector<1x288x8xf32> to vector<288x8xf32>
    %c2_14 = arith.constant 2 : index
    %c0_15 = arith.constant 0 : index
    %c0_16 = arith.constant 0 : index
    %15 = vector.load %arg2[%c2_14, %c0_15, %c0_16] : memref<9x8x16xf32, #tpu.memory_space<vmem>>, vector<1x8x16xf32>
    %16 = vector.shape_cast %15 : vector<1x8x16xf32> to vector<8x16xf32>
    %cst_17 = arith.constant dense<0.000000e+00> : vector<288x16xf32>
    %17 = tpu.matmul %14, %16, %cst_17 {dimension_numbers = #tpu.dot_dimension_numbers<[1], [0], [0], [1], [0, 0, 1, 1], [], []>} : vector<288x8xf32>, vector<8x16xf32>, vector<288x16xf32> -> vector<288x16xf32>
    %18 = arith.addf %12, %17 : vector<288x16xf32>
    %c0_18 = arith.constant 0 : index
    %c18 = arith.constant 18 : index
    %c0_19 = arith.constant 0 : index
    %19 = vector.load %arg1[%c0_18, %c18, %c0_19] : memref<1x326x8xf32, #tpu.memory_space<vmem>>, vector<1x288x8xf32>
    %20 = vector.shape_cast %19 : vector<1x288x8xf32> to vector<288x8xf32>
    %c3 = arith.constant 3 : index
    %c0_20 = arith.constant 0 : index
    %c0_21 = arith.constant 0 : index
    %21 = vector.load %arg2[%c3, %c0_20, %c0_21] : memref<9x8x16xf32, #tpu.memory_space<vmem>>, vector<1x8x16xf32>
    %22 = vector.shape_cast %21 : vector<1x8x16xf32> to vector<8x16xf32>
    %cst_22 = arith.constant dense<0.000000e+00> : vector<288x16xf32>
    %23 = tpu.matmul %20, %22, %cst_22 {dimension_numbers = #tpu.dot_dimension_numbers<[1], [0], [0], [1], [0, 0, 1, 1], [], []>} : vector<288x8xf32>, vector<8x16xf32>, vector<288x16xf32> -> vector<288x16xf32>
    %24 = arith.addf %18, %23 : vector<288x16xf32>
    %c0_23 = arith.constant 0 : index
    %c19 = arith.constant 19 : index
    %c0_24 = arith.constant 0 : index
    %25 = vector.load %arg1[%c0_23, %c19, %c0_24] : memref<1x326x8xf32, #tpu.memory_space<vmem>>, vector<1x288x8xf32>
    %26 = vector.shape_cast %25 : vector<1x288x8xf32> to vector<288x8xf32>
    %c4 = arith.constant 4 : index
    %c0_25 = arith.constant 0 : index
    %c0_26 = arith.constant 0 : index
    %27 = vector.load %arg2[%c4, %c0_25, %c0_26] : memref<9x8x16xf32, #tpu.memory_space<vmem>>, vector<1x8x16xf32>
    %28 = vector.shape_cast %27 : vector<1x8x16xf32> to vector<8x16xf32>
    %cst_27 = arith.constant dense<0.000000e+00> : vector<288x16xf32>
    %29 = tpu.matmul %26, %28, %cst_27 {dimension_numbers = #tpu.dot_dimension_numbers<[1], [0], [0], [1], [0, 0, 1, 1], [], []>} : vector<288x8xf32>, vector<8x16xf32>, vector<288x16xf32> -> vector<288x16xf32>
    %30 = arith.addf %24, %29 : vector<288x16xf32>
    %c0_28 = arith.constant 0 : index
    %c20 = arith.constant 20 : index
    %c0_29 = arith.constant 0 : index
    %31 = vector.load %arg1[%c0_28, %c20, %c0_29] : memref<1x326x8xf32, #tpu.memory_space<vmem>>, vector<1x288x8xf32>
    %32 = vector.shape_cast %31 : vector<1x288x8xf32> to vector<288x8xf32>
    %c5 = arith.constant 5 : index
    %c0_30 = arith.constant 0 : index
    %c0_31 = arith.constant 0 : index
    %33 = vector.load %arg2[%c5, %c0_30, %c0_31] : memref<9x8x16xf32, #tpu.memory_space<vmem>>, vector<1x8x16xf32>
    %34 = vector.shape_cast %33 : vector<1x8x16xf32> to vector<8x16xf32>
    %cst_32 = arith.constant dense<0.000000e+00> : vector<288x16xf32>
    %35 = tpu.matmul %32, %34, %cst_32 {dimension_numbers = #tpu.dot_dimension_numbers<[1], [0], [0], [1], [0, 0, 1, 1], [], []>} : vector<288x8xf32>, vector<8x16xf32>, vector<288x16xf32> -> vector<288x16xf32>
    %36 = arith.addf %30, %35 : vector<288x16xf32>
    %c0_33 = arith.constant 0 : index
    %c36 = arith.constant 36 : index
    %c0_34 = arith.constant 0 : index
    %37 = vector.load %arg1[%c0_33, %c36, %c0_34] : memref<1x326x8xf32, #tpu.memory_space<vmem>>, vector<1x288x8xf32>
    %38 = vector.shape_cast %37 : vector<1x288x8xf32> to vector<288x8xf32>
    %c6 = arith.constant 6 : index
    %c0_35 = arith.constant 0 : index
    %c0_36 = arith.constant 0 : index
    %39 = vector.load %arg2[%c6, %c0_35, %c0_36] : memref<9x8x16xf32, #tpu.memory_space<vmem>>, vector<1x8x16xf32>
    %40 = vector.shape_cast %39 : vector<1x8x16xf32> to vector<8x16xf32>
    %cst_37 = arith.constant dense<0.000000e+00> : vector<288x16xf32>
    %41 = tpu.matmul %38, %40, %cst_37 {dimension_numbers = #tpu.dot_dimension_numbers<[1], [0], [0], [1], [0, 0, 1, 1], [], []>} : vector<288x8xf32>, vector<8x16xf32>, vector<288x16xf32> -> vector<288x16xf32>
    %42 = arith.addf %36, %41 : vector<288x16xf32>
    %c0_38 = arith.constant 0 : index
    %c37 = arith.constant 37 : index
    %c0_39 = arith.constant 0 : index
    %43 = vector.load %arg1[%c0_38, %c37, %c0_39] : memref<1x326x8xf32, #tpu.memory_space<vmem>>, vector<1x288x8xf32>
    %44 = vector.shape_cast %43 : vector<1x288x8xf32> to vector<288x8xf32>
    %c7 = arith.constant 7 : index
    %c0_40 = arith.constant 0 : index
    %c0_41 = arith.constant 0 : index
    %45 = vector.load %arg2[%c7, %c0_40, %c0_41] : memref<9x8x16xf32, #tpu.memory_space<vmem>>, vector<1x8x16xf32>
    %46 = vector.shape_cast %45 : vector<1x8x16xf32> to vector<8x16xf32>
    %cst_42 = arith.constant dense<0.000000e+00> : vector<288x16xf32>
    %47 = tpu.matmul %44, %46, %cst_42 {dimension_numbers = #tpu.dot_dimension_numbers<[1], [0], [0], [1], [0, 0, 1, 1], [], []>} : vector<288x8xf32>, vector<8x16xf32>, vector<288x16xf32> -> vector<288x16xf32>
    %48 = arith.addf %42, %47 : vector<288x16xf32>
    %c0_43 = arith.constant 0 : index
    %c38 = arith.constant 38 : index
    %c0_44 = arith.constant 0 : index
    %49 = vector.load %arg1[%c0_43, %c38, %c0_44] : memref<1x326x8xf32, #tpu.memory_space<vmem>>, vector<1x288x8xf32>
    %50 = vector.shape_cast %49 : vector<1x288x8xf32> to vector<288x8xf32>
    %c8 = arith.constant 8 : index
    %c0_45 = arith.constant 0 : index
    %c0_46 = arith.constant 0 : index
    %51 = vector.load %arg2[%c8, %c0_45, %c0_46] : memref<9x8x16xf32, #tpu.memory_space<vmem>>, vector<1x8x16xf32>
    %52 = vector.shape_cast %51 : vector<1x8x16xf32> to vector<8x16xf32>
    %cst_47 = arith.constant dense<0.000000e+00> : vector<288x16xf32>
    %53 = tpu.matmul %50, %52, %cst_47 {dimension_numbers = #tpu.dot_dimension_numbers<[1], [0], [0], [1], [0, 0, 1, 1], [], []>} : vector<288x8xf32>, vector<8x16xf32>, vector<288x16xf32> -> vector<288x16xf32>
    %54 = arith.addf %48, %53 : vector<288x16xf32>
    %c0_48 = arith.constant 0 : index
    %c0_49 = arith.constant 0 : index
    %55 = vector.load %arg3[%c0_48, %c0_49] : memref<1x16xf32, #tpu.memory_space<vmem>>, vector<1x16xf32>
    %56 = vector.broadcast %55 : vector<1x16xf32> to vector<288x16xf32>
    %57 = arith.addf %54, %56 : vector<288x16xf32>
    %cst_50 = arith.constant 0.000000e+00 : f32
    %58 = vector.broadcast %cst_50 : f32 to vector<288x16xf32>
    %59 = arith.maximumf %57, %58 : vector<288x16xf32>
    %c0_51 = arith.constant 0 : index
    %c0_52 = arith.constant 0 : index
    %c0_53 = arith.constant 0 : index
    %60 = vector.load %arg4[%c0_51, %c0_52, %c0_53] : memref<1x288x16xf32, #tpu.memory_space<vmem>>, vector<1x288x16xf32>
    %61 = vector.shape_cast %60 : vector<1x288x16xf32> to vector<288x16xf32>
    %62 = vector.shape_cast %59 : vector<288x16xf32> to vector<1x288x16xf32>
    tpu.vector_store %arg4[%c0_51, %c0_52, %c0_53], %62 {strides = array<i32>} : memref<1x288x16xf32, #tpu.memory_space<vmem>>, vector<1x288x16xf32>,
    return
  }
  func.func @transform_0(%arg0: i32) -> (i32, i32, i32) {
    %c0_i32 = arith.constant 0 : i32
    %c0_i32_0 = arith.constant 0 : i32
    %c0_i32_1 = arith.constant 0 : i32
    return %arg0, %c0_i32, %c0_i32_0 : i32, i32, i32
  }
  func.func @transform_1(%arg0: i32) -> (i32, i32, i32) {
    %c0_i32 = arith.constant 0 : i32
    %c0_i32_0 = arith.constant 0 : i32
    %c0_i32_1 = arith.constant 0 : i32
    %c0_i32_2 = arith.constant 0 : i32
    return %c0_i32, %c0_i32_0, %c0_i32_1 : i32, i32, i32
  }
  func.func @transform_2(%arg0: i32) -> (i32, i32) {
    %c0_i32 = arith.constant 0 : i32
    %c0_i32_0 = arith.constant 0 : i32
    %c0_i32_1 = arith.constant 0 : i32
    return %c0_i32, %c0_i32_0 : i32, i32
  }
  func.func @transform_3(%arg0: i32) -> (i32, i32, i32) {
    %c0_i32 = arith.constant 0 : i32
    %c0_i32_0 = arith.constant 0 : i32
    %c0_i32_1 = arith.constant 0 : i32
    return %arg0, %c0_i32, %c0_i32_0 : i32, i32, i32
  }
}

</mosaic_0001>

<llo_original>
// kernel: _lambda_.1
$region0: #{_lambda_.1}
  #allocation0 [shape = 'u32[]', space=smem, size = 0x4, offset = 0x4, fixed_abs, tag = 'smem constant byte address 0x4 - core index']
  #allocation1 [shape = 'u32[72,128]{1,0:T(1,128)}', space=vmem, size = 0x9000, scoped, tag = 'internal scratch']
  %s0 = inlined_call_operand.vmem [shape: f32[2,326,8], index: 0, kind: input, shape index: {}]
  %s1 = inlined_call_operand.vmem [shape: f32[9,8,16], index: 1, kind: input, shape index: {}]
  %s2 = inlined_call_operand.vmem [shape: f32[1,16], index: 2, kind: input, shape index: {}]
  %s3 = inlined_call_operand.vmem [shape: f32[2,288,16], index: 3, kind: output, shape index: {}]
  %s4 = sld [smem:[#allocation0]]
  $region45: #{_lambda_.1} parent=0
    _
  %s6 = ssub.s32 1, %s4
  %s7 = scalar_select 0, %s6, %s4
  loop: start=0, step=1, limit=4
  $region2: #{_lambda_.1} parent=0 // loop_pre_header
    _
  $region3: #{_lambda_.1} parent=0 // loop_header
    %s9 = sphi 0, %s13
    %p10 = scmp.ge.s32.totalorder %s9, 4
    %s19 = sphi 0, %s21
    %s22 = sphi 0, %s19
    %s23 = sphi 0, %s22
    %s39 = sphi 0, %s23
    %s43 = sphi 0, %s43
    %s45 = sphi 0, %s43
    %s46 = sphi 0, %s45
    %s60 = sphi 0, %s46
    %s64 = sphi 0, %s64
    %s66 = sphi 0, %s64
    %s67 = sphi 0, %s66
    %s81 = sphi 0, %s67
    %s87 = sphi 0, %s89
    %s90 = sphi 0, %s87
    %s91 = sphi 0, %s90
    %s107 = sphi 0, %s91
  $region4: #{_lambda_.1} parent=0 // loop_header_branch
    %12 = sbr.rel (%p10) target = $region8
  $region5: #{_lambda_.1} parent=0 // loop_body
    %s14 = ssub.s32 %s9, 1
    %s15 = ssub.s32 %s9, 2
    %s16 = sadd.s32 %s9, 1
    %s17 = ssub.s32 %s9, %s16
    %p18 = scmp.eq.s32.totalorder %s17, 0
    %s20 = sadd.s32 %s19, 1
    %s21 = scalar_select %p18, %s19, %s20
    %p24 = pneg %p18
    %p25 = scmp.eq.s32.totalorder %s9, 1
    %p26 = por %p24, %p25
    %p27 = scmp.ne.s32.totalorder %s19, %s22
    %p28 = scmp.eq.s32.totalorder %s9, 0
    %p29 = por %p27, %p28
    %p30 = scmp.ne.s32.totalorder %s19, %s22
    %p31 = scmp.eq.s32.totalorder %s14, 1
    %p32 = por %p30, %p31
    %p33 = scmp.ne.s32.totalorder %s22, %s23
    %p34 = scmp.eq.s32.totalorder %s14, 0
    %p35 = por %p33, %p34
    %p36 = scmp.ne.s32.totalorder %s22, %s23
    %p37 = scmp.eq.s32.totalorder %s15, 1
    %p38 = por %p36, %p37
    %p40 = scmp.ne.s32.totalorder %s23, %s39
    %p41 = scmp.eq.s32.totalorder %s15, 0
    %p42 = por %p40, %p41
    %s44 = sadd.s32 %s43, 1
    %p47 = scmp.eq.s32.totalorder %s9, 1
    %p48 = scmp.ne.s32.totalorder %s43, %s45
    %p49 = scmp.eq.s32.totalorder %s9, 0
    %p50 = por %p48, %p49
    %p51 = scmp.ne.s32.totalorder %s43, %s45
    %p52 = scmp.eq.s32.totalorder %s14, 1
    %p53 = por %p51, %p52
    %p54 = scmp.ne.s32.totalorder %s45, %s46
    %p55 = scmp.eq.s32.totalorder %s14, 0
    %p56 = por %p54, %p55
    %p57 = scmp.ne.s32.totalorder %s45, %s46
    %p58 = scmp.eq.s32.totalorder %s15, 1
    %p59 = por %p57, %p58
    %p61 = scmp.ne.s32.totalorder %s46, %s60
    %p62 = scmp.eq.s32.totalorder %s15, 0
    %p63 = por %p61, %p62
    %s65 = sadd.s32 %s64, 1
    %p68 = scmp.eq.s32.totalorder %s9, 1
    %p69 = scmp.ne.s32.totalorder %s64, %s66
    %p70 = scmp.eq.s32.totalorder %s9, 0
    %p71 = por %p69, %p70
    %p72 = scmp.ne.s32.totalorder %s64, %s66
    %p73 = scmp.eq.s32.totalorder %s14, 1
    %p74 = por %p72, %p73
    %p75 = scmp.ne.s32.totalorder %s66, %s67
    %p76 = scmp.eq.s32.totalorder %s14, 0
    %p77 = por %p75, %p76
    %p78 = scmp.ne.s32.totalorder %s66, %s67
    %p79 = scmp.eq.s32.totalorder %s15, 1
    %p80 = por %p78, %p79
    %p82 = scmp.ne.s32.totalorder %s67, %s81
    %p83 = scmp.eq.s32.totalorder %s15, 0
    %p84 = por %p82, %p83
    %s85 = ssub.s32 %s9, %s16
    %p86 = scmp.eq.s32.totalorder %s85, 0
    %s88 = sadd.s32 %s87, 1
    %s89 = scalar_select %p86, %s87, %s88
    %p92 = pneg %p86
    %p93 = scmp.eq.s32.totalorder %s9, 1
    %p94 = por %p92, %p93
    %p95 = scmp.ne.s32.totalorder %s87, %s90
    %p96 = scmp.eq.s32.totalorder %s9, 0
    %p97 = por %p95, %p96
    %p98 = scmp.ne.s32.totalorder %s87, %s90
    %p99 = scmp.eq.s32.totalorder %s14, 1
    %p100 = por %p98, %p99
    %p101 = scmp.ne.s32.totalorder %s90, %s91
    %p102 = scmp.eq.s32.totalorder %s14, 0
    %p103 = por %p101, %p102
    %p104 = scmp.ne.s32.totalorder %s90, %s91
    %p105 = scmp.eq.s32.totalorder %s15, 1
    %p106 = por %p104, %p105
    %p108 = scmp.ne.s32.totalorder %s91, %s107
    %p109 = scmp.eq.s32.totalorder %s15, 0
    %p110 = por %p108, %p109
    %p111 = scmp.le.s32.totalorder 1, %s9
    %p112 = scmp.lt.s32.totalorder %s9, 3
    %p113 = pnand %p111, %p112
    %p114 = pneg %p113
    // Predicated region
    $region9: #{_lambda_.1} parent=5 // pred_check
      _
    $region10: #{_lambda_.1} parent=5 // pred_check_branch
      %116 = sbr.rel (%p113) target = $region12
    $region11: #{_lambda_.1} parent=5 // pred_region
      %s117 = ssub.s32 %s9, 1
      // Predicated region
      $region13: #{_lambda_.1} parent=11 // pred_check
        %p118 = pneg %p56
      $region14: #{_lambda_.1} parent=11 // pred_check_branch
        %120 = sbr.rel (%p118) target = $region16
      $region15: #{_lambda_.1} parent=11 // pred_region
        _
      $region16: #{_lambda_.1} parent=11 // pred_fallthru
        _
      // Predicated region
      $region17: #{_lambda_.1} parent=11 // pred_check
        %p121 = pneg %p77
      $region18: #{_lambda_.1} parent=11 // pred_check_branch
        %123 = sbr.rel (%p121) target = $region20
      $region19: #{_lambda_.1} parent=11 // pred_region
        _
      $region20: #{_lambda_.1} parent=11 // pred_fallthru
        _
    $region12: #{_lambda_.1} parent=5 // pred_fallthru
      _
    %p124 = scmp.lt.s32.totalorder %s9, 2
    // Predicated region
    $region21: #{_lambda_.1} parent=5 // pred_check
      %p125 = pneg %p124
    $region22: #{_lambda_.1} parent=5 // pred_check_branch
      %127 = sbr.rel (%p125) target = $region24
    $region23: #{_lambda_.1} parent=5 // pred_region
      // Predicated region
      $region25: #{_lambda_.1} parent=23 // pred_check
        %p128 = pneg %p29
      $region26: #{_lambda_.1} parent=23 // pred_check_branch
        %130 = sbr.rel (%p128) target = $region28
      $region27: #{_lambda_.1} parent=23 // pred_region
        %p131 = scmp.lt.s32.totalorder %s9, 1
        %s132 = scalar_select %p131, %s9, 1
        %s133 = smul.addr %s132, 41
        %s134 = smul.addr %s133, 8
        %s135 = scalar_lea.vmem %s0, %s134
      $region28: #{_lambda_.1} parent=23 // pred_fallthru
        _
    $region24: #{_lambda_.1} parent=5 // pred_fallthru
      _
    %p136 = scmp.le.s32.totalorder 1, %s9
    %p137 = scmp.lt.s32.totalorder %s9, 3
    %p138 = pnand %p136, %p137
    %p139 = pneg %p138
    // Predicated region
    $region29: #{_lambda_.1} parent=5 // pred_check
      _
    $region30: #{_lambda_.1} parent=5 // pred_check_branch
      %141 = sbr.rel (%p138) target = $region32
    $region31: #{_lambda_.1} parent=5 // pred_region
      %s142 = ssub.s32 %s9, 1
      %p143 = scmp.lt.s32.totalorder %s14, 1
      %s144 = scalar_select %p143, %s14, 1
      %s145 = smul.addr %s144, 41
      %s146 = smul.addr %s145, 8
      %s147 = scalar_lea.vmem %s0, %s146
      %p148 = pneg %p35
      %p149 = pneg %p32
      %p150 = pneg %p56
      %p151 = pneg %p53
      %p152 = pneg %p77
      %p153 = pneg %p74
      %p154 = pneg %p103
      %p155 = pneg %p100
      %p156 = scmp.lt.s32.totalorder %s14, 1
      %s157 = scalar_select %p156, %s14, 1
      %s158 = smul.addr %s157, 36
      %s159 = smul.addr %s158, 8
      %s160 = scalar_lea.vmem %s3, %s159
      %p161 = scmp.lt.s32.totalorder %s14, 1
      %s162 = scalar_select %p161, %s14, 1
      %s163 = smul.addr %s162, 41
      %s164 = smul.addr %s163, 8
      %s165 = scalar_lea.vmem %s0, %s164
      %p166 = scmp.lt.s32.totalorder %s14, 1
      %s167 = scalar_select %p166, %s14, 1
      %s168 = smul.addr %s167, 36
      %s169 = smul.addr %s168, 8
      %s170 = scalar_lea.vmem %s3, %s169
      %v171 = vld [vmem:[%s165] sm:$0xff]
      %v172 = vld [vmem:[%s165 + $0x8] sm:$0xff]
      %v173 = vld [vmem:[%s165 + $0x10] sm:$0xff]
      %v174 = vld [vmem:[%s165 + $0x18] sm:$0xff]
      %v175 = vld [vmem:[%s165 + $0x20] sm:$0xff]
      %v176 = vld [vmem:[%s165 + $0x28] sm:$0xff]
      %v177 = vld [vmem:[%s165 + $0x30] sm:$0xff]
      %v178 = vld [vmem:[%s165 + $0x38] sm:$0xff]
      %v179 = vld [vmem:[%s165 + $0x40] sm:$0xff]
      %v180 = vld [vmem:[%s165 + $0x48] sm:$0xff]
      %v181 = vld [vmem:[%s165 + $0x50] sm:$0xff]
      %v182 = vld [vmem:[%s165 + $0x58] sm:$0xff]
      %v183 = vld [vmem:[%s165 + $0x60] sm:$0xff]
      %v184 = vld [vmem:[%s165 + $0x68] sm:$0xff]
      %v185 = vld [vmem:[%s165 + $0x70] sm:$0xff]
      %v186 = vld [vmem:[%s165 + $0x78] sm:$0xff]
      %v187 = vld [vmem:[%s165 + $0x80] sm:$0xff]
      %v188 = vld [vmem:[%s165 + $0x88] sm:$0xff]
      %v189 = vld [vmem:[%s165 + $0x90] sm:$0xff]
      %v190 = vld [vmem:[%s165 + $0x98] sm:$0xff]
      %v191 = vld [vmem:[%s165 + $0xa0] sm:$0xff]
      %v192 = vld [vmem:[%s165 + $0xa8] sm:$0xff]
      %v193 = vld [vmem:[%s165 + $0xb0] sm:$0xff]
      %v194 = vld [vmem:[%s165 + $0xb8] sm:$0xff]
      %v195 = vld [vmem:[%s165 + $0xc0] sm:$0xff]
      %v196 = vld [vmem:[%s165 + $0xc8] sm:$0xff]
      %v197 = vld [vmem:[%s165 + $0xd0] sm:$0xff]
      %v198 = vld [vmem:[%s165 + $0xd8] sm:$0xff]
      %v199 = vld [vmem:[%s165 + $0xe0] sm:$0xff]
      %v200 = vld [vmem:[%s165 + $0xe8] sm:$0xff]
      %v201 = vld [vmem:[%s165 + $0xf0] sm:$0xff]
      %v202 = vld [vmem:[%s165 + $0xf8] sm:$0xff]
      %v203 = vld [vmem:[%s165 + $0x100] sm:$0xff]
      %v204 = vld [vmem:[%s165 + $0x108] sm:$0xff]
      %v205 = vld [vmem:[%s165 + $0x110] sm:$0xff]
      %v206 = vld [vmem:[%s165 + $0x118] sm:$0xff]
      %v207 = vld [vmem:[%s1] sm:$0xff]
      %v208 = vld [vmem:[%s165 + $0x1] sm:$0xff]
      %v209 = vld [vmem:[%s165 + $0x9] sm:$0xff]
      %v210 = vld [vmem:[%s165 + $0x11] sm:$0xff]
      %v211 = vld [vmem:[%s165 + $0x19] sm:$0xff]
      %v212 = vld [vmem:[%s165 + $0x21] sm:$0xff]
      %v213 = vld [vmem:[%s165 + $0x29] sm:$0xff]
      %v214 = vld [vmem:[%s165 + $0x31] sm:$0xff]
      %v215 = vld [vmem:[%s165 + $0x39] sm:$0xff]
      %v216 = vld [vmem:[%s165 + $0x41] sm:$0xff]
      %v217 = vld [vmem:[%s165 + $0x49] sm:$0xff]
      %v218 = vld [vmem:[%s165 + $0x51] sm:$0xff]
      %v219 = vld [vmem:[%s165 + $0x59] sm:$0xff]
      %v220 = vld [vmem:[%s165 + $0x61] sm:$0xff]
      %v221 = vld [vmem:[%s165 + $0x69] sm:$0xff]
      %v222 = vld [vmem:[%s165 + $0x71] sm:$0xff]
      %v223 = vld [vmem:[%s165 + $0x79] sm:$0xff]
      %v224 = vld [vmem:[%s165 + $0x81] sm:$0xff]
      %v225 = vld [vmem:[%s165 + $0x89] sm:$0xff]
      %v226 = vld [vmem:[%s165 + $0x91] sm:$0xff]
      %v227 = vld [vmem:[%s165 + $0x99] sm:$0xff]
      %v228 = vld [vmem:[%s165 + $0xa1] sm:$0xff]
      %v229 = vld [vmem:[%s165 + $0xa9] sm:$0xff]
      %v230 = vld [vmem:[%s165 + $0xb1] sm:$0xff]
      %v231 = vld [vmem:[%s165 + $0xb9] sm:$0xff]
      %v232 = vld [vmem:[%s165 + $0xc1] sm:$0xff]
      %v233 = vld [vmem:[%s165 + $0xc9] sm:$0xff]
      %v234 = vld [vmem:[%s165 + $0xd1] sm:$0xff]
      %v235 = vld [vmem:[%s165 + $0xd9] sm:$0xff]
      %v236 = vld [vmem:[%s165 + $0xe1] sm:$0xff]
      %v237 = vld [vmem:[%s165 + $0xe9] sm:$0xff]
      %v238 = vld [vmem:[%s165 + $0xf1] sm:$0xff]
      %v239 = vld [vmem:[%s165 + $0xf9] sm:$0xff]
      %v240 = vld [vmem:[%s165 + $0x101] sm:$0xff]
      %v241 = vld [vmem:[%s165 + $0x109] sm:$0xff]
      %v242 = vld [vmem:[%s165 + $0x111] sm:$0xff]
      %v243 = vld [vmem:[%s165 + $0x119] sm:$0xff]
      %s244 = scalar_lea.vmem %s1, 8
      %v245 = vld [vmem:[%s244] sm:$0xff]
      %vm246 = vcmask 64512
      %v248 = vsel %vm246, %v208, 0
      %v251 = vsel %vm246, %v209, 0
      %v254 = vsel %vm246, %v210, 0
      %v257 = vsel %vm246, %v211, 0
      %v260 = vsel %vm246, %v212, 0
      %v263 = vsel %vm246, %v213, 0
      %v266 = vsel %vm246, %v214, 0
      %v269 = vsel %vm246, %v215, 0
      %v272 = vsel %vm246, %v216, 0
      %v275 = vsel %vm246, %v217, 0
      %v278 = vsel %vm246, %v218, 0
      %v281 = vsel %vm246, %v219, 0
      %v284 = vsel %vm246, %v220, 0
      %v287 = vsel %vm246, %v221, 0
      %v290 = vsel %vm246, %v222, 0
      %v293 = vsel %vm246, %v223, 0
      %v296 = vsel %vm246, %v224, 0
      %v299 = vsel %vm246, %v225, 0
      %v302 = vsel %vm246, %v226, 0
      %v305 = vsel %vm246, %v227, 0
      %v308 = vsel %vm246, %v228, 0
      %v311 = vsel %vm246, %v229, 0
      %v314 = vsel %vm246, %v230, 0
      %v317 = vsel %vm246, %v231, 0
      %v320 = vsel %vm246, %v232, 0
      %v323 = vsel %vm246, %v233, 0
      %v326 = vsel %vm246, %v234, 0
      %v329 = vsel %vm246, %v235, 0
      %v332 = vsel %vm246, %v236, 0
      %v335 = vsel %vm246, %v237, 0
      %v338 = vsel %vm246, %v238, 0
      %v341 = vsel %vm246, %v239, 0
      %v344 = vsel %vm246, %v240, 0
      %v347 = vsel %vm246, %v241, 0
      %v350 = vsel %vm246, %v242, 0
      %v353 = vsel %vm246, %v243, 0
      %355 = vmatpush.msra.mxu0 0.0
      %356 = vmatpush.msra.mxu0 0.0
      %357 = vmatpush.msra.mxu0 0.0
      %358 = vmatpush.msra.mxu0 0.0
      %359 = vmatpush.msra.mxu0 0.0
      %360 = vmatpush.msra.mxu0 0.0
      %361 = vmatpush.msra.mxu0 0.0
      %362 = vmatpush.msra.mxu0 0.0
      %363 = vmatpush.msra.mxu0 0.0
      %364 = vmatpush.msra.mxu0 0.0
      %365 = vmatpush.msra.mxu0 0.0
      %366 = vmatpush.msra.mxu0 0.0
      %367 = vmatpush.msra.mxu0 0.0
      %368 = vmatpush.msra.mxu0 0.0
      %369 = vmatpush.msra.mxu0 0.0
      %370 = vmatpush.msra.mxu0 %v245
      %371 = vmatmul.f32.gmra.mxu0 %v248
      %v372 = vpop.f32.mrf.mxu0
      %v373 = vadd.f32 0.0, %v372
      %374 = vmatmul.f32.gmra.mxu0 %v251
      %v375 = vpop.f32.mrf.mxu0
      %v376 = vadd.f32 0.0, %v375
      %377 = vmatmul.f32.gmra.mxu0 %v254
      %v378 = vpop.f32.mrf.mxu0
      %v379 = vadd.f32 0.0, %v378
      %380 = vmatmul.f32.gmra.mxu0 %v257
      %v381 = vpop.f32.mrf.mxu0
      %v382 = vadd.f32 0.0, %v381
      %383 = vmatmul.f32.gmra.mxu0 %v260
      %v384 = vpop.f32.mrf.mxu0
      %v385 = vadd.f32 0.0, %v384
      %386 = vmatmul.f32.gmra.mxu0 %v263
      %v387 = vpop.f32.mrf.mxu0
      %v388 = vadd.f32 0.0, %v387
      %389 = vmatmul.f32.gmra.mxu0 %v266
      %v390 = vpop.f32.mrf.mxu0
      %v391 = vadd.f32 0.0, %v390
      %392 = vmatmul.f32.gmra.mxu0 %v269
      %v393 = vpop.f32.mrf.mxu0
      %v394 = vadd.f32 0.0, %v393
      %395 = vmatmul.f32.gmra.mxu0 %v272
      %v396 = vpop.f32.mrf.mxu0
      %v397 = vadd.f32 0.0, %v396
      %398 = vmatmul.f32.gmra.mxu0 %v275
      %v399 = vpop.f32.mrf.mxu0
      %v400 = vadd.f32 0.0, %v399
      %401 = vmatmul.f32.gmra.mxu0 %v278
      %v402 = vpop.f32.mrf.mxu0
      %v403 = vadd.f32 0.0, %v402
      %404 = vmatmul.f32.gmra.mxu0 %v281
      %v405 = vpop.f32.mrf.mxu0
      %v406 = vadd.f32 0.0, %v405
      %407 = vmatmul.f32.gmra.mxu0 %v284
      %v408 = vpop.f32.mrf.mxu0
      %v409 = vadd.f32 0.0, %v408
      %410 = vmatmul.f32.gmra.mxu0 %v287
      %v411 = vpop.f32.mrf.mxu0
      %v412 = vadd.f32 0.0, %v411
      %413 = vmatmul.f32.gmra.mxu0 %v290
      %v414 = vpop.f32.mrf.mxu0
      %v415 = vadd.f32 0.0, %v414
      %416 = vmatmul.f32.gmra.mxu0 %v293
      %v417 = vpop.f32.mrf.mxu0
      %v418 = vadd.f32 0.0, %v417
      %419 = vmatmul.f32.gmra.mxu0 %v296
      %v420 = vpop.f32.mrf.mxu0
      %v421 = vadd.f32 0.0, %v420
      %422 = vmatmul.f32.gmra.mxu0 %v299
      %v423 = vpop.f32.mrf.mxu0
      %v424 = vadd.f32 0.0, %v423
      %425 = vmatmul.f32.gmra.mxu0 %v302
      %v426 = vpop.f32.mrf.mxu0
      %v427 = vadd.f32 0.0, %v426
      %428 = vmatmul.f32.gmra.mxu0 %v305
      %v429 = vpop.f32.mrf.mxu0
      %v430 = vadd.f32 0.0, %v429
      %431 = vmatmul.f32.gmra.mxu0 %v308
      %v432 = vpop.f32.mrf.mxu0
      %v433 = vadd.f32 0.0, %v432
      %434 = vmatmul.f32.gmra.mxu0 %v311
      %v435 = vpop.f32.mrf.mxu0
      %v436 = vadd.f32 0.0, %v435
      %437 = vmatmul.f32.gmra.mxu0 %v314
      %v438 = vpop.f32.mrf.mxu0
      %v439 = vadd.f32 0.0, %v438
      %440 = vmatmul.f32.gmra.mxu0 %v317
      %v441 = vpop.f32.mrf.mxu0
      %v442 = vadd.f32 0.0, %v441
      %443 = vmatmul.f32.gmra.mxu0 %v320
      %v444 = vpop.f32.mrf.mxu0
      %v445 = vadd.f32 0.0, %v444
      %446 = vmatmul.f32.gmra.mxu0 %v323
      %v447 = vpop.f32.mrf.mxu0
      %v448 = vadd.f32 0.0, %v447
      %449 = vmatmul.f32.gmra.mxu0 %v326
      %v450 = vpop.f32.mrf.mxu0
      %v451 = vadd.f32 0.0, %v450
      %452 = vmatmul.f32.gmra.mxu0 %v329
      %v453 = vpop.f32.mrf.mxu0
      %v454 = vadd.f32 0.0, %v453
      %455 = vmatmul.f32.gmra.mxu0 %v332
      %v456 = vpop.f32.mrf.mxu0
      %v457 = vadd.f32 0.0, %v456
      %458 = vmatmul.f32.gmra.mxu0 %v335
      %v459 = vpop.f32.mrf.mxu0
      %v460 = vadd.f32 0.0, %v459
      %461 = vmatmul.f32.gmra.mxu0 %v338
      %v462 = vpop.f32.mrf.mxu0
      %v463 = vadd.f32 0.0, %v462
      %464 = vmatmul.f32.gmra.mxu0 %v341
      %v465 = vpop.f32.mrf.mxu0
      %v466 = vadd.f32 0.0, %v465
      %467 = vmatmul.f32.gmra.mxu0 %v344
      %v468 = vpop.f32.mrf.mxu0
      %v469 = vadd.f32 0.0, %v468
      %470 = vmatmul.f32.gmra.mxu0 %v347
      %v471 = vpop.f32.mrf.mxu0
      %v472 = vadd.f32 0.0, %v471
      %473 = vmatmul.f32.gmra.mxu0 %v350
      %v474 = vpop.f32.mrf.mxu0
      %v475 = vadd.f32 0.0, %v474
      %476 = vmatmul.f32.gmra.mxu0 %v353
      %v477 = vpop.f32.mrf.mxu0
      %v478 = vadd.f32 0.0, %v477
      %479 = vdwg.mxu0
      %v481 = vsel %vm246, %v171, 0
      %v484 = vsel %vm246, %v172, 0
      %v487 = vsel %vm246, %v173, 0
      %v490 = vsel %vm246, %v174, 0
      %v493 = vsel %vm246, %v175, 0
      %v496 = vsel %vm246, %v176, 0
      %v499 = vsel %vm246, %v177, 0
      %v502 = vsel %vm246, %v178, 0
      %v505 = vsel %vm246, %v179, 0
      %v508 = vsel %vm246, %v180, 0
      %v511 = vsel %vm246, %v181, 0
      %v514 = vsel %vm246, %v182, 0
      %v517 = vsel %vm246, %v183, 0
      %v520 = vsel %vm246, %v184, 0
      %v523 = vsel %vm246, %v185, 0
      %v526 = vsel %vm246, %v186, 0
      %v529 = vsel %vm246, %v187, 0
      %v532 = vsel %vm246, %v188, 0
      %v535 = vsel %vm246, %v189, 0
      %v538 = vsel %vm246, %v190, 0
      %v541 = vsel %vm246, %v191, 0
      %v544 = vsel %vm246, %v192, 0
      %v547 = vsel %vm246, %v193, 0
      %v550 = vsel %vm246, %v194, 0
      %v553 = vsel %vm246, %v195, 0
      %v556 = vsel %vm246, %v196, 0
      %v559 = vsel %vm246, %v197, 0
      %v562 = vsel %vm246, %v198, 0
      %v565 = vsel %vm246, %v199, 0
      %v568 = vsel %vm246, %v200, 0
      %v571 = vsel %vm246, %v201, 0
      %v574 = vsel %vm246, %v202, 0
      %v577 = vsel %vm246, %v203, 0
      %v580 = vsel %vm246, %v204, 0
      %v583 = vsel %vm246, %v205, 0
      %v586 = vsel %vm246, %v206, 0
      %588 = vmatpush.msra.mxu0 0.0
      %589 = vmatpush.msra.mxu0 0.0
      %590 = vmatpush.msra.mxu0 0.0
      %591 = vmatpush.msra.mxu0 0.0
      %592 = vmatpush.msra.mxu0 0.0
      %593 = vmatpush.msra.mxu0 0.0
      %594 = vmatpush.msra.mxu0 0.0
      %595 = vmatpush.msra.mxu0 0.0
      %596 = vmatpush.msra.mxu0 0.0
      %597 = vmatpush.msra.mxu0 0.0
      %598 = vmatpush.msra.mxu0 0.0
      %599 = vmatpush.msra.mxu0 0.0
      %600 = vmatpush.msra.mxu0 0.0
      %601 = vmatpush.msra.mxu0 0.0
      %602 = vmatpush.msra.mxu0 0.0
      %603 = vmatpush.msra.mxu0 %v207
      %604 = vmatmul.f32.gmra.mxu0 %v481
      %v605 = vpop.f32.mrf.mxu0
      %v606 = vadd.f32 %v373, %v605
      %607 = vmatmul.f32.gmra.mxu0 %v484
      %v608 = vpop.f32.mrf.mxu0
      %v609 = vadd.f32 %v376, %v608
      %610 = vmatmul.f32.gmra.mxu0 %v487
      %v611 = vpop.f32.mrf.mxu0
      %v612 = vadd.f32 %v379, %v611
      %613 = vmatmul.f32.gmra.mxu0 %v490
      %v614 = vpop.f32.mrf.mxu0
      %v615 = vadd.f32 %v382, %v614
      %616 = vmatmul.f32.gmra.mxu0 %v493
      %v617 = vpop.f32.mrf.mxu0
      %v618 = vadd.f32 %v385, %v617
      %619 = vmatmul.f32.gmra.mxu0 %v496
      %v620 = vpop.f32.mrf.mxu0
      %v621 = vadd.f32 %v388, %v620
      %622 = vmatmul.f32.gmra.mxu0 %v499
      %v623 = vpop.f32.mrf.mxu0
      %v624 = vadd.f32 %v391, %v623
      %625 = vmatmul.f32.gmra.mxu0 %v502
      %v626 = vpop.f32.mrf.mxu0
      %v627 = vadd.f32 %v394, %v626
      %628 = vmatmul.f32.gmra.mxu0 %v505
      %v629 = vpop.f32.mrf.mxu0
      %v630 = vadd.f32 %v397, %v629
      %631 = vmatmul.f32.gmra.mxu0 %v508
      %v632 = vpop.f32.mrf.mxu0
      %v633 = vadd.f32 %v400, %v632
      %634 = vmatmul.f32.gmra.mxu0 %v511
      %v635 = vpop.f32.mrf.mxu0
      %v636 = vadd.f32 %v403, %v635
      %637 = vmatmul.f32.gmra.mxu0 %v514
      %v638 = vpop.f32.mrf.mxu0
      %v639 = vadd.f32 %v406, %v638
      %640 = vmatmul.f32.gmra.mxu0 %v517
      %v641 = vpop.f32.mrf.mxu0
      %v642 = vadd.f32 %v409, %v641
      %643 = vmatmul.f32.gmra.mxu0 %v520
      %v644 = vpop.f32.mrf.mxu0
      %v645 = vadd.f32 %v412, %v644
      %646 = vmatmul.f32.gmra.mxu0 %v523
      %v647 = vpop.f32.mrf.mxu0
      %v648 = vadd.f32 %v415, %v647
      %649 = vmatmul.f32.gmra.mxu0 %v526
      %v650 = vpop.f32.mrf.mxu0
      %v651 = vadd.f32 %v418, %v650
      %652 = vmatmul.f32.gmra.mxu0 %v529
      %v653 = vpop.f32.mrf.mxu0
      %v654 = vadd.f32 %v421, %v653
      %655 = vmatmul.f32.gmra.mxu0 %v532
      %v656 = vpop.f32.mrf.mxu0
      %v657 = vadd.f32 %v424, %v656
      %658 = vmatmul.f32.gmra.mxu0 %v535
      %v659 = vpop.f32.mrf.mxu0
      %v660 = vadd.f32 %v427, %v659
      %661 = vmatmul.f32.gmra.mxu0 %v538
      %v662 = vpop.f32.mrf.mxu0
      %v663 = vadd.f32 %v430, %v662
      %664 = vmatmul.f32.gmra.mxu0 %v541
      %v665 = vpop.f32.mrf.mxu0
      %v666 = vadd.f32 %v433, %v665
      %667 = vmatmul.f32.gmra.mxu0 %v544
      %v668 = vpop.f32.mrf.mxu0
      %v669 = vadd.f32 %v436, %v668
      %670 = vmatmul.f32.gmra.mxu0 %v547
      %v671 = vpop.f32.mrf.mxu0
      %v672 = vadd.f32 %v439, %v671
      %673 = vmatmul.f32.gmra.mxu0 %v550
      %v674 = vpop.f32.mrf.mxu0
      %v675 = vadd.f32 %v442, %v674
      %676 = vmatmul.f32.gmra.mxu0 %v553
      %v677 = vpop.f32.mrf.mxu0
      %v678 = vadd.f32 %v445, %v677
      %679 = vmatmul.f32.gmra.mxu0 %v556
      %v680 = vpop.f32.mrf.mxu0
      %v681 = vadd.f32 %v448, %v680
      %682 = vmatmul.f32.gmra.mxu0 %v559
      %v683 = vpop.f32.mrf.mxu0
      %v684 = vadd.f32 %v451, %v683
      %685 = vmatmul.f32.gmra.mxu0 %v562
      %v686 = vpop.f32.mrf.mxu0
      %v687 = vadd.f32 %v454, %v686
      %688 = vmatmul.f32.gmra.mxu0 %v565
      %v689 = vpop.f32.mrf.mxu0
      %v690 = vadd.f32 %v457, %v689
      %691 = vmatmul.f32.gmra.mxu0 %v568
      %v692 = vpop.f32.mrf.mxu0
      %v693 = vadd.f32 %v460, %v692
      %694 = vmatmul.f32.gmra.mxu0 %v571
      %v695 = vpop.f32.mrf.mxu0
      %v696 = vadd.f32 %v463, %v695
      %697 = vmatmul.f32.gmra.mxu0 %v574
      %v698 = vpop.f32.mrf.mxu0
      %v699 = vadd.f32 %v466, %v698
      %700 = vmatmul.f32.gmra.mxu0 %v577
      %v701 = vpop.f32.mrf.mxu0
      %v702 = vadd.f32 %v469, %v701
      %703 = vmatmul.f32.gmra.mxu0 %v580
      %v704 = vpop.f32.mrf.mxu0
      %v705 = vadd.f32 %v472, %v704
      %706 = vmatmul.f32.gmra.mxu0 %v583
      %v707 = vpop.f32.mrf.mxu0
      %v708 = vadd.f32 %v475, %v707
      %709 = vmatmul.f32.gmra.mxu0 %v586
      %v710 = vpop.f32.mrf.mxu0
      %v711 = vadd.f32 %v478, %v710
      %712 = vdwg.mxu0
      %v713 = vld [vmem:[%s165 + $0x2] sm:$0xff]
      %v714 = vld [vmem:[%s165 + $0xa] sm:$0xff]
      %v715 = vld [vmem:[%s165 + $0x12] sm:$0xff]
      %v716 = vld [vmem:[%s165 + $0x1a] sm:$0xff]
      %v717 = vld [vmem:[%s165 + $0x22] sm:$0xff]
      %v718 = vld [vmem:[%s165 + $0x2a] sm:$0xff]
      %v719 = vld [vmem:[%s165 + $0x32] sm:$0xff]
      %v720 = vld [vmem:[%s165 + $0x3a] sm:$0xff]
      %v721 = vld [vmem:[%s165 + $0x42] sm:$0xff]
      %v722 = vld [vmem:[%s165 + $0x4a] sm:$0xff]
      %v723 = vld [vmem:[%s165 + $0x52] sm:$0xff]
      %v724 = vld [vmem:[%s165 + $0x5a] sm:$0xff]
      %v725 = vld [vmem:[%s165 + $0x62] sm:$0xff]
      %v726 = vld [vmem:[%s165 + $0x6a] sm:$0xff]
      %v727 = vld [vmem:[%s165 + $0x72] sm:$0xff]
      %v728 = vld [vmem:[%s165 + $0x7a] sm:$0xff]
      %v729 = vld [vmem:[%s165 + $0x82] sm:$0xff]
      %v730 = vld [vmem:[%s165 + $0x8a] sm:$0xff]
      %v731 = vld [vmem:[%s165 + $0x92] sm:$0xff]
      %v732 = vld [vmem:[%s165 + $0x9a] sm:$0xff]
      %v733 = vld [vmem:[%s165 + $0xa2] sm:$0xff]
      %v734 = vld [vmem:[%s165 + $0xaa] sm:$0xff]
      %v735 = vld [vmem:[%s165 + $0xb2] sm:$0xff]
      %v736 = vld [vmem:[%s165 + $0xba] sm:$0xff]
      %v737 = vld [vmem:[%s165 + $0xc2] sm:$0xff]
      %v738 = vld [vmem:[%s165 + $0xca] sm:$0xff]
      %v739 = vld [vmem:[%s165 + $0xd2] sm:$0xff]
      %v740 = vld [vmem:[%s165 + $0xda] sm:$0xff]
      %v741 = vld [vmem:[%s165 + $0xe2] sm:$0xff]
      %v742 = vld [vmem:[%s165 + $0xea] sm:$0xff]
      %v743 = vld [vmem:[%s165 + $0xf2] sm:$0xff]
      %v744 = vld [vmem:[%s165 + $0xfa] sm:$0xff]
      %v745 = vld [vmem:[%s165 + $0x102] sm:$0xff]
      %v746 = vld [vmem:[%s165 + $0x10a] sm:$0xff]
      %v747 = vld [vmem:[%s165 + $0x112] sm:$0xff]
      %v748 = vld [vmem:[%s165 + $0x11a] sm:$0xff]
      %s749 = scalar_lea.vmem %s1, 16
      %v750 = vld [vmem:[%s749] sm:$0xff]
      %v752 = vsel %vm246, %v713, 0
      %v755 = vsel %vm246, %v714, 0
      %v758 = vsel %vm246, %v715, 0
      %v761 = vsel %vm246, %v716, 0
      %v764 = vsel %vm246, %v717, 0
      %v767 = vsel %vm246, %v718, 0
      %v770 = vsel %vm246, %v719, 0
      %v773 = vsel %vm246, %v720, 0
      %v776 = vsel %vm246, %v721, 0
      %v779 = vsel %vm246, %v722, 0
      %v782 = vsel %vm246, %v723, 0
      %v785 = vsel %vm246, %v724, 0
      %v788 = vsel %vm246, %v725, 0
      %v791 = vsel %vm246, %v726, 0
      %v794 = vsel %vm246, %v727, 0
      %v797 = vsel %vm246, %v728, 0
      %v800 = vsel %vm246, %v729, 0
      %v803 = vsel %vm246, %v730, 0
      %v806 = vsel %vm246, %v731, 0
      %v809 = vsel %vm246, %v732, 0
      %v812 = vsel %vm246, %v733, 0
      %v815 = vsel %vm246, %v734, 0
      %v818 = vsel %vm246, %v735, 0
      %v821 = vsel %vm246, %v736, 0
      %v824 = vsel %vm246, %v737, 0
      %v827 = vsel %vm246, %v738, 0
      %v830 = vsel %vm246, %v739, 0
      %v833 = vsel %vm246, %v740, 0
      %v836 = vsel %vm246, %v741, 0
      %v839 = vsel %vm246, %v742, 0
      %v842 = vsel %vm246, %v743, 0
      %v845 = vsel %vm246, %v744, 0
      %v848 = vsel %vm246, %v745, 0
      %v851 = vsel %vm246, %v746, 0
      %v854 = vsel %vm246, %v747, 0
      %v857 = vsel %vm246, %v748, 0
      %859 = vmatpush.msra.mxu0 0.0
      %860 = vmatpush.msra.mxu0 0.0
      %861 = vmatpush.msra.mxu0 0.0
      %862 = vmatpush.msra.mxu0 0.0
      %863 = vmatpush.msra.mxu0 0.0
      %864 = vmatpush.msra.mxu0 0.0
      %865 = vmatpush.msra.mxu0 0.0
      %866 = vmatpush.msra.mxu0 0.0
      %867 = vmatpush.msra.mxu0 0.0
      %868 = vmatpush.msra.mxu0 0.0
      %869 = vmatpush.msra.mxu0 0.0
      %870 = vmatpush.msra.mxu0 0.0
      %871 = vmatpush.msra.mxu0 0.0
      %872 = vmatpush.msra.mxu0 0.0
      %873 = vmatpush.msra.mxu0 0.0
      %874 = vmatpush.msra.mxu0 %v750
      %875 = vmatmul.f32.gmra.mxu0 %v752
      %v876 = vpop.f32.mrf.mxu0
      %v877 = vadd.f32 0.0, %v876
      %878 = vmatmul.f32.gmra.mxu0 %v755
      %v879 = vpop.f32.mrf.mxu0
      %v880 = vadd.f32 0.0, %v879
      %881 = vmatmul.f32.gmra.mxu0 %v758
      %v882 = vpop.f32.mrf.mxu0
      %v883 = vadd.f32 0.0, %v882
      %884 = vmatmul.f32.gmra.mxu0 %v761
      %v885 = vpop.f32.mrf.mxu0
      %v886 = vadd.f32 0.0, %v885
      %887 = vmatmul.f32.gmra.mxu0 %v764
      %v888 = vpop.f32.mrf.mxu0
      %v889 = vadd.f32 0.0, %v888
      %890 = vmatmul.f32.gmra.mxu0 %v767
      %v891 = vpop.f32.mrf.mxu0
      %v892 = vadd.f32 0.0, %v891
      %893 = vmatmul.f32.gmra.mxu0 %v770
      %v894 = vpop.f32.mrf.mxu0
      %v895 = vadd.f32 0.0, %v894
      %896 = vmatmul.f32.gmra.mxu0 %v773
      %v897 = vpop.f32.mrf.mxu0
      %v898 = vadd.f32 0.0, %v897
      %899 = vmatmul.f32.gmra.mxu0 %v776
      %v900 = vpop.f32.mrf.mxu0
      %v901 = vadd.f32 0.0, %v900
      %902 = vmatmul.f32.gmra.mxu0 %v779
      %v903 = vpop.f32.mrf.mxu0
      %v904 = vadd.f32 0.0, %v903
      %905 = vmatmul.f32.gmra.mxu0 %v782
      %v906 = vpop.f32.mrf.mxu0
      %v907 = vadd.f32 0.0, %v906
      %908 = vmatmul.f32.gmra.mxu0 %v785
      %v909 = vpop.f32.mrf.mxu0
      %v910 = vadd.f32 0.0, %v909
      %911 = vmatmul.f32.gmra.mxu0 %v788
      %v912 = vpop.f32.mrf.mxu0
      %v913 = vadd.f32 0.0, %v912
      %914 = vmatmul.f32.gmra.mxu0 %v791
      %v915 = vpop.f32.mrf.mxu0
      %v916 = vadd.f32 0.0, %v915
      %917 = vmatmul.f32.gmra.mxu0 %v794
      %v918 = vpop.f32.mrf.mxu0
      %v919 = vadd.f32 0.0, %v918
      %920 = vmatmul.f32.gmra.mxu0 %v797
      %v921 = vpop.f32.mrf.mxu0
      %v922 = vadd.f32 0.0, %v921
      %923 = vmatmul.f32.gmra.mxu0 %v800
      %v924 = vpop.f32.mrf.mxu0
      %v925 = vadd.f32 0.0, %v924
      %926 = vmatmul.f32.gmra.mxu0 %v803
      %v927 = vpop.f32.mrf.mxu0
      %v928 = vadd.f32 0.0, %v927
      %929 = vmatmul.f32.gmra.mxu0 %v806
      %v930 = vpop.f32.mrf.mxu0
      %v931 = vadd.f32 0.0, %v930
      %932 = vmatmul.f32.gmra.mxu0 %v809
      %v933 = vpop.f32.mrf.mxu0
      %v934 = vadd.f32 0.0, %v933
      %935 = vmatmul.f32.gmra.mxu0 %v812
      %v936 = vpop.f32.mrf.mxu0
      %v937 = vadd.f32 0.0, %v936
      %938 = vmatmul.f32.gmra.mxu0 %v815
      %v939 = vpop.f32.mrf.mxu0
      %v940 = vadd.f32 0.0, %v939
      %941 = vmatmul.f32.gmra.mxu0 %v818
      %v942 = vpop.f32.mrf.mxu0
      %v943 = vadd.f32 0.0, %v942
      %944 = vmatmul.f32.gmra.mxu0 %v821
      %v945 = vpop.f32.mrf.mxu0
      %v946 = vadd.f32 0.0, %v945
      %947 = vmatmul.f32.gmra.mxu0 %v824
      %v948 = vpop.f32.mrf.mxu0
      %v949 = vadd.f32 0.0, %v948
      %950 = vmatmul.f32.gmra.mxu0 %v827
      %v951 = vpop.f32.mrf.mxu0
      %v952 = vadd.f32 0.0, %v951
      %953 = vmatmul.f32.gmra.mxu0 %v830
      %v954 = vpop.f32.mrf.mxu0
      %v955 = vadd.f32 0.0, %v954
      %956 = vmatmul.f32.gmra.mxu0 %v833
      %v957 = vpop.f32.mrf.mxu0
      %v958 = vadd.f32 0.0, %v957
      %959 = vmatmul.f32.gmra.mxu0 %v836
      %v960 = vpop.f32.mrf.mxu0
      %v961 = vadd.f32 0.0, %v960
      %962 = vmatmul.f32.gmra.mxu0 %v839
      %v963 = vpop.f32.mrf.mxu0
      %v964 = vadd.f32 0.0, %v963
      %965 = vmatmul.f32.gmra.mxu0 %v842
      %v966 = vpop.f32.mrf.mxu0
      %v967 = vadd.f32 0.0, %v966
      %968 = vmatmul.f32.gmra.mxu0 %v845
      %v969 = vpop.f32.mrf.mxu0
      %v970 = vadd.f32 0.0, %v969
      %971 = vmatmul.f32.gmra.mxu0 %v848
      %v972 = vpop.f32.mrf.mxu0
      %v973 = vadd.f32 0.0, %v972
      %974 = vmatmul.f32.gmra.mxu0 %v851
      %v975 = vpop.f32.mrf.mxu0
      %v976 = vadd.f32 0.0, %v975
      %977 = vmatmul.f32.gmra.mxu0 %v854
      %v978 = vpop.f32.mrf.mxu0
      %v979 = vadd.f32 0.0, %v978
      %980 = vmatmul.f32.gmra.mxu0 %v857
      %v981 = vpop.f32.mrf.mxu0
      %v982 = vadd.f32 0.0, %v981
      %983 = vdwg.mxu0
      %v984 = vadd.f32 %v606, %v877
      %v985 = vadd.f32 %v609, %v880
      %v986 = vadd.f32 %v612, %v883
      %v987 = vadd.f32 %v615, %v886
      %v988 = vadd.f32 %v618, %v889
      %v989 = vadd.f32 %v621, %v892
      %v990 = vadd.f32 %v624, %v895
      %v991 = vadd.f32 %v627, %v898
      %v992 = vadd.f32 %v630, %v901
      %v993 = vadd.f32 %v633, %v904
      %v994 = vadd.f32 %v636, %v907
      %v995 = vadd.f32 %v639, %v910
      %v996 = vadd.f32 %v642, %v913
      %v997 = vadd.f32 %v645, %v916
      %v998 = vadd.f32 %v648, %v919
      %v999 = vadd.f32 %v651, %v922
      %v1000 = vadd.f32 %v654, %v925
      %v1001 = vadd.f32 %v657, %v928
      %v1002 = vadd.f32 %v660, %v931
      %v1003 = vadd.f32 %v663, %v934
      %v1004 = vadd.f32 %v666, %v937
      %v1005 = vadd.f32 %v669, %v940
      %v1006 = vadd.f32 %v672, %v943
      %v1007 = vadd.f32 %v675, %v946
      %v1008 = vadd.f32 %v678, %v949
      %v1009 = vadd.f32 %v681, %v952
      %v1010 = vadd.f32 %v684, %v955
      %v1011 = vadd.f32 %v687, %v958
      %v1012 = vadd.f32 %v690, %v961
      %v1013 = vadd.f32 %v693, %v964
      %v1014 = vadd.f32 %v696, %v967
      %v1015 = vadd.f32 %v699, %v970
      %v1016 = vadd.f32 %v702, %v973
      %v1017 = vadd.f32 %v705, %v976
      %v1018 = vadd.f32 %v708, %v979
      %v1019 = vadd.f32 %v711, %v982
      %v1020 = vld [vmem:[%s165 + $0x12] sm:$0xff]
      %v1021 = vld [vmem:[%s165 + $0x1a] sm:$0xff]
      %v1022 = vld [vmem:[%s165 + $0x22] sm:$0xff]
      %v1023 = vld [vmem:[%s165 + $0x2a] sm:$0xff]
      %v1024 = vld [vmem:[%s165 + $0x32] sm:$0xff]
      %v1025 = vld [vmem:[%s165 + $0x3a] sm:$0xff]
      %v1026 = vld [vmem:[%s165 + $0x42] sm:$0xff]
      %v1027 = vld [vmem:[%s165 + $0x4a] sm:$0xff]
      %v1028 = vld [vmem:[%s165 + $0x52] sm:$0xff]
      %v1029 = vld [vmem:[%s165 + $0x5a] sm:$0xff]
      %v1030 = vld [vmem:[%s165 + $0x62] sm:$0xff]
      %v1031 = vld [vmem:[%s165 + $0x6a] sm:$0xff]
      %v1032 = vld [vmem:[%s165 + $0x72] sm:$0xff]
      %v1033 = vld [vmem:[%s165 + $0x7a] sm:$0xff]
      %v1034 = vld [vmem:[%s165 + $0x82] sm:$0xff]
      %v1035 = vld [vmem:[%s165 + $0x8a] sm:$0xff]
      %v1036 = vld [vmem:[%s165 + $0x92] sm:$0xff]
      %v1037 = vld [vmem:[%s165 + $0x9a] sm:$0xff]
      %v1038 = vld [vmem:[%s165 + $0xa2] sm:$0xff]
      %v1039 = vld [vmem:[%s165 + $0xaa] sm:$0xff]
      %v1040 = vld [vmem:[%s165 + $0xb2] sm:$0xff]
      %v1041 = vld [vmem:[%s165 + $0xba] sm:$0xff]
      %v1042 = vld [vmem:[%s165 + $0xc2] sm:$0xff]
      %v1043 = vld [vmem:[%s165 + $0xca] sm:$0xff]
      %v1044 = vld [vmem:[%s165 + $0xd2] sm:$0xff]
      %v1045 = vld [vmem:[%s165 + $0xda] sm:$0xff]
      %v1046 = vld [vmem:[%s165 + $0xe2] sm:$0xff]
      %v1047 = vld [vmem:[%s165 + $0xea] sm:$0xff]
      %v1048 = vld [vmem:[%s165 + $0xf2] sm:$0xff]
      %v1049 = vld [vmem:[%s165 + $0xfa] sm:$0xff]
      %v1050 = vld [vmem:[%s165 + $0x102] sm:$0xff]
      %v1051 = vld [vmem:[%s165 + $0x10a] sm:$0xff]
      %v1052 = vld [vmem:[%s165 + $0x112] sm:$0xff]
      %v1053 = vld [vmem:[%s165 + $0x11a] sm:$0xff]
      %v1054 = vld [vmem:[%s165 + $0x122] sm:$0xff]
      %v1055 = vld [vmem:[%s165 + $0x12a] sm:$0xff]
      %s1056 = scalar_lea.vmem %s1, 24
      %v1057 = vld [vmem:[%s1056] sm:$0xff]
      %v1059 = vsel %vm246, %v1020, 0
      %v1062 = vsel %vm246, %v1021, 0
      %v1065 = vsel %vm246, %v1022, 0
      %v1068 = vsel %vm246, %v1023, 0
      %v1071 = vsel %vm246, %v1024, 0
      %v1074 = vsel %vm246, %v1025, 0
      %v1077 = vsel %vm246, %v1026, 0
      %v1080 = vsel %vm246, %v1027, 0
      %v1083 = vsel %vm246, %v1028, 0
      %v1086 = vsel %vm246, %v1029, 0
      %v1089 = vsel %vm246, %v1030, 0
      %v1092 = vsel %vm246, %v1031, 0
      %v1095 = vsel %vm246, %v1032, 0
      %v1098 = vsel %vm246, %v1033, 0
      %v1101 = vsel %vm246, %v1034, 0
      %v1104 = vsel %vm246, %v1035, 0
      %v1107 = vsel %vm246, %v1036, 0
      %v1110 = vsel %vm246, %v1037, 0
      %v1113 = vsel %vm246, %v1038, 0
      %v1116 = vsel %vm246, %v1039, 0
      %v1119 = vsel %vm246, %v1040, 0
      %v1122 = vsel %vm246, %v1041, 0
      %v1125 = vsel %vm246, %v1042, 0
      %v1128 = vsel %vm246, %v1043, 0
      %v1131 = vsel %vm246, %v1044, 0
      %v1134 = vsel %vm246, %v1045, 0
      %v1137 = vsel %vm246, %v1046, 0
      %v1140 = vsel %vm246, %v1047, 0
      %v1143 = vsel %vm246, %v1048, 0
      %v1146 = vsel %vm246, %v1049, 0
      %v1149 = vsel %vm246, %v1050, 0
      %v1152 = vsel %vm246, %v1051, 0
      %v1155 = vsel %vm246, %v1052, 0
      %v1158 = vsel %vm246, %v1053, 0
      %v1161 = vsel %vm246, %v1054, 0
      %v1164 = vsel %vm246, %v1055, 0
      %1166 = vmatpush.msra.mxu0 0.0
      %1167 = vmatpush.msra.mxu0 0.0
      %1168 = vmatpush.msra.mxu0 0.0
      %1169 = vmatpush.msra.mxu0 0.0
      %1170 = vmatpush.msra.mxu0 0.0
      %1171 = vmatpush.msra.mxu0 0.0
      %1172 = vmatpush.msra.mxu0 0.0
      %1173 = vmatpush.msra.mxu0 0.0
      %1174 = vmatpush.msra.mxu0 0.0
      %1175 = vmatpush.msra.mxu0 0.0
      %1176 = vmatpush.msra.mxu0 0.0
      %1177 = vmatpush.msra.mxu0 0.0
      %1178 = vmatpush.msra.mxu0 0.0
      %1179 = vmatpush.msra.mxu0 0.0
      %1180 = vmatpush.msra.mxu0 0.0
      %1181 = vmatpush.msra.mxu0 %v1057
      %1182 = vmatmul.f32.gmra.mxu0 %v1059
      %v1183 = vpop.f32.mrf.mxu0
      %v1184 = vadd.f32 0.0, %v1183
      %1185 = vmatmul.f32.gmra.mxu0 %v1062
      %v1186 = vpop.f32.mrf.mxu0
      %v1187 = vadd.f32 0.0, %v1186
      %1188 = vmatmul.f32.gmra.mxu0 %v1065
      %v1189 = vpop.f32.mrf.mxu0
      %v1190 = vadd.f32 0.0, %v1189
      %1191 = vmatmul.f32.gmra.mxu0 %v1068
      %v1192 = vpop.f32.mrf.mxu0
      %v1193 = vadd.f32 0.0, %v1192
      %1194 = vmatmul.f32.gmra.mxu0 %v1071
      %v1195 = vpop.f32.mrf.mxu0
      %v1196 = vadd.f32 0.0, %v1195
      %1197 = vmatmul.f32.gmra.mxu0 %v1074
      %v1198 = vpop.f32.mrf.mxu0
      %v1199 = vadd.f32 0.0, %v1198
      %1200 = vmatmul.f32.gmra.mxu0 %v1077
      %v1201 = vpop.f32.mrf.mxu0
      %v1202 = vadd.f32 0.0, %v1201
      %1203 = vmatmul.f32.gmra.mxu0 %v1080
      %v1204 = vpop.f32.mrf.mxu0
      %v1205 = vadd.f32 0.0, %v1204
      %1206 = vmatmul.f32.gmra.mxu0 %v1083
      %v1207 = vpop.f32.mrf.mxu0
      %v1208 = vadd.f32 0.0, %v1207
      %1209 = vmatmul.f32.gmra.mxu0 %v1086
      %v1210 = vpop.f32.mrf.mxu0
      %v1211 = vadd.f32 0.0, %v1210
      %1212 = vmatmul.f32.gmra.mxu0 %v1089
      %v1213 = vpop.f32.mrf.mxu0
      %v1214 = vadd.f32 0.0, %v1213
      %1215 = vmatmul.f32.gmra.mxu0 %v1092
      %v1216 = vpop.f32.mrf.mxu0
      %v1217 = vadd.f32 0.0, %v1216
      %1218 = vmatmul.f32.gmra.mxu0 %v1095
      %v1219 = vpop.f32.mrf.mxu0
      %v1220 = vadd.f32 0.0, %v1219
      %1221 = vmatmul.f32.gmra.mxu0 %v1098
      %v1222 = vpop.f32.mrf.mxu0
      %v1223 = vadd.f32 0.0, %v1222
      %1224 = vmatmul.f32.gmra.mxu0 %v1101
      %v1225 = vpop.f32.mrf.mxu0
      %v1226 = vadd.f32 0.0, %v1225
      %1227 = vmatmul.f32.gmra.mxu0 %v1104
      %v1228 = vpop.f32.mrf.mxu0
      %v1229 = vadd.f32 0.0, %v1228
      %1230 = vmatmul.f32.gmra.mxu0 %v1107
      %v1231 = vpop.f32.mrf.mxu0
      %v1232 = vadd.f32 0.0, %v1231
      %1233 = vmatmul.f32.gmra.mxu0 %v1110
      %v1234 = vpop.f32.mrf.mxu0
      %v1235 = vadd.f32 0.0, %v1234
      %1236 = vmatmul.f32.gmra.mxu0 %v1113
      %v1237 = vpop.f32.mrf.mxu0
      %v1238 = vadd.f32 0.0, %v1237
      %1239 = vmatmul.f32.gmra.mxu0 %v1116
      %v1240 = vpop.f32.mrf.mxu0
      %v1241 = vadd.f32 0.0, %v1240
      %1242 = vmatmul.f32.gmra.mxu0 %v1119
      %v1243 = vpop.f32.mrf.mxu0
      %v1244 = vadd.f32 0.0, %v1243
      %1245 = vmatmul.f32.gmra.mxu0 %v1122
      %v1246 = vpop.f32.mrf.mxu0
      %v1247 = vadd.f32 0.0, %v1246
      %1248 = vmatmul.f32.gmra.mxu0 %v1125
      %v1249 = vpop.f32.mrf.mxu0
      %v1250 = vadd.f32 0.0, %v1249
      %1251 = vmatmul.f32.gmra.mxu0 %v1128
      %v1252 = vpop.f32.mrf.mxu0
      %v1253 = vadd.f32 0.0, %v1252
      %1254 = vmatmul.f32.gmra.mxu0 %v1131
      %v1255 = vpop.f32.mrf.mxu0
      %v1256 = vadd.f32 0.0, %v1255
      %1257 = vmatmul.f32.gmra.mxu0 %v1134
      %v1258 = vpop.f32.mrf.mxu0
      %v1259 = vadd.f32 0.0, %v1258
      %1260 = vmatmul.f32.gmra.mxu0 %v1137
      %v1261 = vpop.f32.mrf.mxu0
      %v1262 = vadd.f32 0.0, %v1261
      %1263 = vmatmul.f32.gmra.mxu0 %v1140
      %v1264 = vpop.f32.mrf.mxu0
      %v1265 = vadd.f32 0.0, %v1264
      %1266 = vmatmul.f32.gmra.mxu0 %v1143
      %v1267 = vpop.f32.mrf.mxu0
      %v1268 = vadd.f32 0.0, %v1267
      %1269 = vmatmul.f32.gmra.mxu0 %v1146
      %v1270 = vpop.f32.mrf.mxu0
      %v1271 = vadd.f32 0.0, %v1270
      %1272 = vmatmul.f32.gmra.mxu0 %v1149
      %v1273 = vpop.f32.mrf.mxu0
      %v1274 = vadd.f32 0.0, %v1273
      %1275 = vmatmul.f32.gmra.mxu0 %v1152
      %v1276 = vpop.f32.mrf.mxu0
      %v1277 = vadd.f32 0.0, %v1276
      %1278 = vmatmul.f32.gmra.mxu0 %v1155
      %v1279 = vpop.f32.mrf.mxu0
      %v1280 = vadd.f32 0.0, %v1279
      %1281 = vmatmul.f32.gmra.mxu0 %v1158
      %v1282 = vpop.f32.mrf.mxu0
      %v1283 = vadd.f32 0.0, %v1282
      %1284 = vmatmul.f32.gmra.mxu0 %v1161
      %v1285 = vpop.f32.mrf.mxu0
      %v1286 = vadd.f32 0.0, %v1285
      %1287 = vmatmul.f32.gmra.mxu0 %v1164
      %v1288 = vpop.f32.mrf.mxu0
      %v1289 = vadd.f32 0.0, %v1288
      %1290 = vdwg.mxu0
      %v1291 = vadd.f32 %v984, %v1184
      %v1292 = vadd.f32 %v985, %v1187
      %v1293 = vadd.f32 %v986, %v1190
      %v1294 = vadd.f32 %v987, %v1193
      %v1295 = vadd.f32 %v988, %v1196
      %v1296 = vadd.f32 %v989, %v1199
      %v1297 = vadd.f32 %v990, %v1202
      %v1298 = vadd.f32 %v991, %v1205
      %v1299 = vadd.f32 %v992, %v1208
      %v1300 = vadd.f32 %v993, %v1211
      %v1301 = vadd.f32 %v994, %v1214
      %v1302 = vadd.f32 %v995, %v1217
      %v1303 = vadd.f32 %v996, %v1220
      %v1304 = vadd.f32 %v997, %v1223
      %v1305 = vadd.f32 %v998, %v1226
      %v1306 = vadd.f32 %v999, %v1229
      %v1307 = vadd.f32 %v1000, %v1232
      %v1308 = vadd.f32 %v1001, %v1235
      %v1309 = vadd.f32 %v1002, %v1238
      %v1310 = vadd.f32 %v1003, %v1241
      %v1311 = vadd.f32 %v1004, %v1244
      %v1312 = vadd.f32 %v1005, %v1247
      %v1313 = vadd.f32 %v1006, %v1250
      %v1314 = vadd.f32 %v1007, %v1253
      %v1315 = vadd.f32 %v1008, %v1256
      %v1316 = vadd.f32 %v1009, %v1259
      %v1317 = vadd.f32 %v1010, %v1262
      %v1318 = vadd.f32 %v1011, %v1265
      %v1319 = vadd.f32 %v1012, %v1268
      %v1320 = vadd.f32 %v1013, %v1271
      %v1321 = vadd.f32 %v1014, %v1274
      %v1322 = vadd.f32 %v1015, %v1277
      %v1323 = vadd.f32 %v1016, %v1280
      %v1324 = vadd.f32 %v1017, %v1283
      %v1325 = vadd.f32 %v1018, %v1286
      %v1326 = vadd.f32 %v1019, %v1289
      %v1327 = vld [vmem:[%s165 + $0x13] sm:$0xff]
      %v1328 = vld [vmem:[%s165 + $0x1b] sm:$0xff]
      %v1329 = vld [vmem:[%s165 + $0x23] sm:$0xff]
      %v1330 = vld [vmem:[%s165 + $0x2b] sm:$0xff]
      %v1331 = vld [vmem:[%s165 + $0x33] sm:$0xff]
      %v1332 = vld [vmem:[%s165 + $0x3b] sm:$0xff]
      %v1333 = vld [vmem:[%s165 + $0x43] sm:$0xff]
      %v1334 = vld [vmem:[%s165 + $0x4b] sm:$0xff]
      %v1335 = vld [vmem:[%s165 + $0x53] sm:$0xff]
      %v1336 = vld [vmem:[%s165 + $0x5b] sm:$0xff]
      %v1337 = vld [vmem:[%s165 + $0x63] sm:$0xff]
      %v1338 = vld [vmem:[%s165 + $0x6b] sm:$0xff]
      %v1339 = vld [vmem:[%s165 + $0x73] sm:$0xff]
      %v1340 = vld [vmem:[%s165 + $0x7b] sm:$0xff]
      %v1341 = vld [vmem:[%s165 + $0x83] sm:$0xff]
      %v1342 = vld [vmem:[%s165 + $0x8b] sm:$0xff]
      %v1343 = vld [vmem:[%s165 + $0x93] sm:$0xff]
      %v1344 = vld [vmem:[%s165 + $0x9b] sm:$0xff]
      %v1345 = vld [vmem:[%s165 + $0xa3] sm:$0xff]
      %v1346 = vld [vmem:[%s165 + $0xab] sm:$0xff]
      %v1347 = vld [vmem:[%s165 + $0xb3] sm:$0xff]
      %v1348 = vld [vmem:[%s165 + $0xbb] sm:$0xff]
      %v1349 = vld [vmem:[%s165 + $0xc3] sm:$0xff]
      %v1350 = vld [vmem:[%s165 + $0xcb] sm:$0xff]
      %v1351 = vld [vmem:[%s165 + $0xd3] sm:$0xff]
      %v1352 = vld [vmem:[%s165 + $0xdb] sm:$0xff]
      %v1353 = vld [vmem:[%s165 + $0xe3] sm:$0xff]
      %v1354 = vld [vmem:[%s165 + $0xeb] sm:$0xff]
      %v1355 = vld [vmem:[%s165 + $0xf3] sm:$0xff]
      %v1356 = vld [vmem:[%s165 + $0xfb] sm:$0xff]
      %v1357 = vld [vmem:[%s165 + $0x103] sm:$0xff]
      %v1358 = vld [vmem:[%s165 + $0x10b] sm:$0xff]
      %v1359 = vld [vmem:[%s165 + $0x113] sm:$0xff]
      %v1360 = vld [vmem:[%s165 + $0x11b] sm:$0xff]
      %v1361 = vld [vmem:[%s165 + $0x123] sm:$0xff]
      %v1362 = vld [vmem:[%s165 + $0x12b] sm:$0xff]
      %s1363 = scalar_lea.vmem %s1, 32
      %v1364 = vld [vmem:[%s1363] sm:$0xff]
      %v1366 = vsel %vm246, %v1327, 0
      %v1369 = vsel %vm246, %v1328, 0
      %v1372 = vsel %vm246, %v1329, 0
      %v1375 = vsel %vm246, %v1330, 0
      %v1378 = vsel %vm246, %v1331, 0
      %v1381 = vsel %vm246, %v1332, 0
      %v1384 = vsel %vm246, %v1333, 0
      %v1387 = vsel %vm246, %v1334, 0
      %v1390 = vsel %vm246, %v1335, 0
      %v1393 = vsel %vm246, %v1336, 0
      %v1396 = vsel %vm246, %v1337, 0
      %v1399 = vsel %vm246, %v1338, 0
      %v1402 = vsel %vm246, %v1339, 0
      %v1405 = vsel %vm246, %v1340, 0
      %v1408 = vsel %vm246, %v1341, 0
      %v1411 = vsel %vm246, %v1342, 0
      %v1414 = vsel %vm246, %v1343, 0
      %v1417 = vsel %vm246, %v1344, 0
      %v1420 = vsel %vm246, %v1345, 0
      %v1423 = vsel %vm246, %v1346, 0
      %v1426 = vsel %vm246, %v1347, 0
      %v1429 = vsel %vm246, %v1348, 0
      %v1432 = vsel %vm246, %v1349, 0
      %v1435 = vsel %vm246, %v1350, 0
      %v1438 = vsel %vm246, %v1351, 0
      %v1441 = vsel %vm246, %v1352, 0
      %v1444 = vsel %vm246, %v1353, 0
      %v1447 = vsel %vm246, %v1354, 0
      %v1450 = vsel %vm246, %v1355, 0
      %v1453 = vsel %vm246, %v1356, 0
      %v1456 = vsel %vm246, %v1357, 0
      %v1459 = vsel %vm246, %v1358, 0
      %v1462 = vsel %vm246, %v1359, 0
      %v1465 = vsel %vm246, %v1360, 0
      %v1468 = vsel %vm246, %v1361, 0
      %v1471 = vsel %vm246, %v1362, 0
      %1473 = vmatpush.msra.mxu0 0.0
      %1474 = vmatpush.msra.mxu0 0.0
      %1475 = vmatpush.msra.mxu0 0.0
      %1476 = vmatpush.msra.mxu0 0.0
      %1477 = vmatpush.msra.mxu0 0.0
      %1478 = vmatpush.msra.mxu0 0.0
      %1479 = vmatpush.msra.mxu0 0.0
      %1480 = vmatpush.msra.mxu0 0.0
      %1481 = vmatpush.msra.mxu0 0.0
      %1482 = vmatpush.msra.mxu0 0.0
      %1483 = vmatpush.msra.mxu0 0.0
      %1484 = vmatpush.msra.mxu0 0.0
      %1485 = vmatpush.msra.mxu0 0.0
      %1486 = vmatpush.msra.mxu0 0.0
      %1487 = vmatpush.msra.mxu0 0.0
      %1488 = vmatpush.msra.mxu0 %v1364
      %1489 = vmatmul.f32.gmra.mxu0 %v1366
      %v1490 = vpop.f32.mrf.mxu0
      %v1491 = vadd.f32 0.0, %v1490
      %1492 = vmatmul.f32.gmra.mxu0 %v1369
      %v1493 = vpop.f32.mrf.mxu0
      %v1494 = vadd.f32 0.0, %v1493
      %1495 = vmatmul.f32.gmra.mxu0 %v1372
      %v1496 = vpop.f32.mrf.mxu0
      %v1497 = vadd.f32 0.0, %v1496
      %1498 = vmatmul.f32.gmra.mxu0 %v1375
      %v1499 = vpop.f32.mrf.mxu0
      %v1500 = vadd.f32 0.0, %v1499
      %1501 = vmatmul.f32.gmra.mxu0 %v1378
      %v1502 = vpop.f32.mrf.mxu0
      %v1503 = vadd.f32 0.0, %v1502
      %1504 = vmatmul.f32.gmra.mxu0 %v1381
      %v1505 = vpop.f32.mrf.mxu0
      %v1506 = vadd.f32 0.0, %v1505
      %1507 = vmatmul.f32.gmra.mxu0 %v1384
      %v1508 = vpop.f32.mrf.mxu0
      %v1509 = vadd.f32 0.0, %v1508
      %1510 = vmatmul.f32.gmra.mxu0 %v1387
      %v1511 = vpop.f32.mrf.mxu0
      %v1512 = vadd.f32 0.0, %v1511
      %1513 = vmatmul.f32.gmra.mxu0 %v1390
      %v1514 = vpop.f32.mrf.mxu0
      %v1515 = vadd.f32 0.0, %v1514
      %1516 = vmatmul.f32.gmra.mxu0 %v1393
      %v1517 = vpop.f32.mrf.mxu0
      %v1518 = vadd.f32 0.0, %v1517
      %1519 = vmatmul.f32.gmra.mxu0 %v1396
      %v1520 = vpop.f32.mrf.mxu0
      %v1521 = vadd.f32 0.0, %v1520
      %1522 = vmatmul.f32.gmra.mxu0 %v1399
      %v1523 = vpop.f32.mrf.mxu0
      %v1524 = vadd.f32 0.0, %v1523
      %1525 = vmatmul.f32.gmra.mxu0 %v1402
      %v1526 = vpop.f32.mrf.mxu0
      %v1527 = vadd.f32 0.0, %v1526
      %1528 = vmatmul.f32.gmra.mxu0 %v1405
      %v1529 = vpop.f32.mrf.mxu0
      %v1530 = vadd.f32 0.0, %v1529
      %1531 = vmatmul.f32.gmra.mxu0 %v1408
      %v1532 = vpop.f32.mrf.mxu0
      %v1533 = vadd.f32 0.0, %v1532
      %1534 = vmatmul.f32.gmra.mxu0 %v1411
      %v1535 = vpop.f32.mrf.mxu0
      %v1536 = vadd.f32 0.0, %v1535
      %1537 = vmatmul.f32.gmra.mxu0 %v1414
      %v1538 = vpop.f32.mrf.mxu0
      %v1539 = vadd.f32 0.0, %v1538
      %1540 = vmatmul.f32.gmra.mxu0 %v1417
      %v1541 = vpop.f32.mrf.mxu0
      %v1542 = vadd.f32 0.0, %v1541
      %1543 = vmatmul.f32.gmra.mxu0 %v1420
      %v1544 = vpop.f32.mrf.mxu0
      %v1545 = vadd.f32 0.0, %v1544
      %1546 = vmatmul.f32.gmra.mxu0 %v1423
      %v1547 = vpop.f32.mrf.mxu0
      %v1548 = vadd.f32 0.0, %v1547
      %1549 = vmatmul.f32.gmra.mxu0 %v1426
      %v1550 = vpop.f32.mrf.mxu0
      %v1551 = vadd.f32 0.0, %v1550
      %1552 = vmatmul.f32.gmra.mxu0 %v1429
      %v1553 = vpop.f32.mrf.mxu0
      %v1554 = vadd.f32 0.0, %v1553
      %1555 = vmatmul.f32.gmra.mxu0 %v1432
      %v1556 = vpop.f32.mrf.mxu0
      %v1557 = vadd.f32 0.0, %v1556
      %1558 = vmatmul.f32.gmra.mxu0 %v1435
      %v1559 = vpop.f32.mrf.mxu0
      %v1560 = vadd.f32 0.0, %v1559
      %1561 = vmatmul.f32.gmra.mxu0 %v1438
      %v1562 = vpop.f32.mrf.mxu0
      %v1563 = vadd.f32 0.0, %v1562
      %1564 = vmatmul.f32.gmra.mxu0 %v1441
      %v1565 = vpop.f32.mrf.mxu0
      %v1566 = vadd.f32 0.0, %v1565
      %1567 = vmatmul.f32.gmra.mxu0 %v1444
      %v1568 = vpop.f32.mrf.mxu0
      %v1569 = vadd.f32 0.0, %v1568
      %1570 = vmatmul.f32.gmra.mxu0 %v1447
      %v1571 = vpop.f32.mrf.mxu0
      %v1572 = vadd.f32 0.0, %v1571
      %1573 = vmatmul.f32.gmra.mxu0 %v1450
      %v1574 = vpop.f32.mrf.mxu0
      %v1575 = vadd.f32 0.0, %v1574
      %1576 = vmatmul.f32.gmra.mxu0 %v1453
      %v1577 = vpop.f32.mrf.mxu0
      %v1578 = vadd.f32 0.0, %v1577
      %1579 = vmatmul.f32.gmra.mxu0 %v1456
      %v1580 = vpop.f32.mrf.mxu0
      %v1581 = vadd.f32 0.0, %v1580
      %1582 = vmatmul.f32.gmra.mxu0 %v1459
      %v1583 = vpop.f32.mrf.mxu0
      %v1584 = vadd.f32 0.0, %v1583
      %1585 = vmatmul.f32.gmra.mxu0 %v1462
      %v1586 = vpop.f32.mrf.mxu0
      %v1587 = vadd.f32 0.0, %v1586
      %1588 = vmatmul.f32.gmra.mxu0 %v1465
      %v1589 = vpop.f32.mrf.mxu0
      %v1590 = vadd.f32 0.0, %v1589
      %1591 = vmatmul.f32.gmra.mxu0 %v1468
      %v1592 = vpop.f32.mrf.mxu0
      %v1593 = vadd.f32 0.0, %v1592
      %1594 = vmatmul.f32.gmra.mxu0 %v1471
      %v1595 = vpop.f32.mrf.mxu0
      %v1596 = vadd.f32 0.0, %v1595
      %1597 = vdwg.mxu0
      %v1598 = vadd.f32 %v1291, %v1491
      %v1599 = vadd.f32 %v1292, %v1494
      %v1600 = vadd.f32 %v1293, %v1497
      %v1601 = vadd.f32 %v1294, %v1500
      %v1602 = vadd.f32 %v1295, %v1503
      %v1603 = vadd.f32 %v1296, %v1506
      %v1604 = vadd.f32 %v1297, %v1509
      %v1605 = vadd.f32 %v1298, %v1512
      %v1606 = vadd.f32 %v1299, %v1515
      %v1607 = vadd.f32 %v1300, %v1518
      %v1608 = vadd.f32 %v1301, %v1521
      %v1609 = vadd.f32 %v1302, %v1524
      %v1610 = vadd.f32 %v1303, %v1527
      %v1611 = vadd.f32 %v1304, %v1530
      %v1612 = vadd.f32 %v1305, %v1533
      %v1613 = vadd.f32 %v1306, %v1536
      %v1614 = vadd.f32 %v1307, %v1539
      %v1615 = vadd.f32 %v1308, %v1542
      %v1616 = vadd.f32 %v1309, %v1545
      %v1617 = vadd.f32 %v1310, %v1548
      %v1618 = vadd.f32 %v1311, %v1551
      %v1619 = vadd.f32 %v1312, %v1554
      %v1620 = vadd.f32 %v1313, %v1557
      %v1621 = vadd.f32 %v1314, %v1560
      %v1622 = vadd.f32 %v1315, %v1563
      %v1623 = vadd.f32 %v1316, %v1566
      %v1624 = vadd.f32 %v1317, %v1569
      %v1625 = vadd.f32 %v1318, %v1572
      %v1626 = vadd.f32 %v1319, %v1575
      %v1627 = vadd.f32 %v1320, %v1578
      %v1628 = vadd.f32 %v1321, %v1581
      %v1629 = vadd.f32 %v1322, %v1584
      %v1630 = vadd.f32 %v1323, %v1587
      %v1631 = vadd.f32 %v1324, %v1590
      %v1632 = vadd.f32 %v1325, %v1593
      %v1633 = vadd.f32 %v1326, %v1596
      %v1634 = vld [vmem:[%s165 + $0x14] sm:$0xff]
      %v1635 = vld [vmem:[%s165 + $0x1c] sm:$0xff]
      %v1636 = vld [vmem:[%s165 + $0x24] sm:$0xff]
      %v1637 = vld [vmem:[%s165 + $0x2c] sm:$0xff]
      %v1638 = vld [vmem:[%s165 + $0x34] sm:$0xff]
      %v1639 = vld [vmem:[%s165 + $0x3c] sm:$0xff]
      %v1640 = vld [vmem:[%s165 + $0x44] sm:$0xff]
      %v1641 = vld [vmem:[%s165 + $0x4c] sm:$0xff]
      %v1642 = vld [vmem:[%s165 + $0x54] sm:$0xff]
      %v1643 = vld [vmem:[%s165 + $0x5c] sm:$0xff]
      %v1644 = vld [vmem:[%s165 + $0x64] sm:$0xff]
      %v1645 = vld [vmem:[%s165 + $0x6c] sm:$0xff]
      %v1646 = vld [vmem:[%s165 + $0x74] sm:$0xff]
      %v1647 = vld [vmem:[%s165 + $0x7c] sm:$0xff]
      %v1648 = vld [vmem:[%s165 + $0x84] sm:$0xff]
      %v1649 = vld [vmem:[%s165 + $0x8c] sm:$0xff]
      %v1650 = vld [vmem:[%s165 + $0x94] sm:$0xff]
      %v1651 = vld [vmem:[%s165 + $0x9c] sm:$0xff]
      %v1652 = vld [vmem:[%s165 + $0xa4] sm:$0xff]
      %v1653 = vld [vmem:[%s165 + $0xac] sm:$0xff]
      %v1654 = vld [vmem:[%s165 + $0xb4] sm:$0xff]
      %v1655 = vld [vmem:[%s165 + $0xbc] sm:$0xff]
      %v1656 = vld [vmem:[%s165 + $0xc4] sm:$0xff]
      %v1657 = vld [vmem:[%s165 + $0xcc] sm:$0xff]
      %v1658 = vld [vmem:[%s165 + $0xd4] sm:$0xff]
      %v1659 = vld [vmem:[%s165 + $0xdc] sm:$0xff]
      %v1660 = vld [vmem:[%s165 + $0xe4] sm:$0xff]
      %v1661 = vld [vmem:[%s165 + $0xec] sm:$0xff]
      %v1662 = vld [vmem:[%s165 + $0xf4] sm:$0xff]
      %v1663 = vld [vmem:[%s165 + $0xfc] sm:$0xff]
      %v1664 = vld [vmem:[%s165 + $0x104] sm:$0xff]
      %v1665 = vld [vmem:[%s165 + $0x10c] sm:$0xff]
      %v1666 = vld [vmem:[%s165 + $0x114] sm:$0xff]
      %v1667 = vld [vmem:[%s165 + $0x11c] sm:$0xff]
      %v1668 = vld [vmem:[%s165 + $0x124] sm:$0xff]
      %v1669 = vld [vmem:[%s165 + $0x12c] sm:$0xff]
      %s1670 = scalar_lea.vmem %s1, 40
      %v1671 = vld [vmem:[%s1670] sm:$0xff]
      %v1673 = vsel %vm246, %v1634, 0
      %v1676 = vsel %vm246, %v1635, 0
      %v1679 = vsel %vm246, %v1636, 0
      %v1682 = vsel %vm246, %v1637, 0
      %v1685 = vsel %vm246, %v1638, 0
      %v1688 = vsel %vm246, %v1639, 0
      %v1691 = vsel %vm246, %v1640, 0
      %v1694 = vsel %vm246, %v1641, 0
      %v1697 = vsel %vm246, %v1642, 0
      %v1700 = vsel %vm246, %v1643, 0
      %v1703 = vsel %vm246, %v1644, 0
      %v1706 = vsel %vm246, %v1645, 0
      %v1709 = vsel %vm246, %v1646, 0
      %v1712 = vsel %vm246, %v1647, 0
      %v1715 = vsel %vm246, %v1648, 0
      %v1718 = vsel %vm246, %v1649, 0
      %v1721 = vsel %vm246, %v1650, 0
      %v1724 = vsel %vm246, %v1651, 0
      %v1727 = vsel %vm246, %v1652, 0
      %v1730 = vsel %vm246, %v1653, 0
      %v1733 = vsel %vm246, %v1654, 0
      %v1736 = vsel %vm246, %v1655, 0
      %v1739 = vsel %vm246, %v1656, 0
      %v1742 = vsel %vm246, %v1657, 0
      %v1745 = vsel %vm246, %v1658, 0
      %v1748 = vsel %vm246, %v1659, 0
      %v1751 = vsel %vm246, %v1660, 0
      %v1754 = vsel %vm246, %v1661, 0
      %v1757 = vsel %vm246, %v1662, 0
      %v1760 = vsel %vm246, %v1663, 0
      %v1763 = vsel %vm246, %v1664, 0
      %v1766 = vsel %vm246, %v1665, 0
      %v1769 = vsel %vm246, %v1666, 0
      %v1772 = vsel %vm246, %v1667, 0
      %v1775 = vsel %vm246, %v1668, 0
      %v1778 = vsel %vm246, %v1669, 0
      %1780 = vmatpush.msra.mxu0 0.0
      %1781 = vmatpush.msra.mxu0 0.0
      %1782 = vmatpush.msra.mxu0 0.0
      %1783 = vmatpush.msra.mxu0 0.0
      %1784 = vmatpush.msra.mxu0 0.0
      %1785 = vmatpush.msra.mxu0 0.0
      %1786 = vmatpush.msra.mxu0 0.0
      %1787 = vmatpush.msra.mxu0 0.0
      %1788 = vmatpush.msra.mxu0 0.0
      %1789 = vmatpush.msra.mxu0 0.0
      %1790 = vmatpush.msra.mxu0 0.0
      %1791 = vmatpush.msra.mxu0 0.0
      %1792 = vmatpush.msra.mxu0 0.0
      %1793 = vmatpush.msra.mxu0 0.0
      %1794 = vmatpush.msra.mxu0 0.0
      %1795 = vmatpush.msra.mxu0 %v1671
      %1796 = vmatmul.f32.gmra.mxu0 %v1673
      %v1797 = vpop.f32.mrf.mxu0
      %v1798 = vadd.f32 0.0, %v1797
      %1799 = vmatmul.f32.gmra.mxu0 %v1676
      %v1800 = vpop.f32.mrf.mxu0
      %v1801 = vadd.f32 0.0, %v1800
      %1802 = vmatmul.f32.gmra.mxu0 %v1679
      %v1803 = vpop.f32.mrf.mxu0
      %v1804 = vadd.f32 0.0, %v1803
      %1805 = vmatmul.f32.gmra.mxu0 %v1682
      %v1806 = vpop.f32.mrf.mxu0
      %v1807 = vadd.f32 0.0, %v1806
      %1808 = vmatmul.f32.gmra.mxu0 %v1685
      %v1809 = vpop.f32.mrf.mxu0
      %v1810 = vadd.f32 0.0, %v1809
      %1811 = vmatmul.f32.gmra.mxu0 %v1688
      %v1812 = vpop.f32.mrf.mxu0
      %v1813 = vadd.f32 0.0, %v1812
      %1814 = vmatmul.f32.gmra.mxu0 %v1691
      %v1815 = vpop.f32.mrf.mxu0
      %v1816 = vadd.f32 0.0, %v1815
      %1817 = vmatmul.f32.gmra.mxu0 %v1694
      %v1818 = vpop.f32.mrf.mxu0
      %v1819 = vadd.f32 0.0, %v1818
      %1820 = vmatmul.f32.gmra.mxu0 %v1697
      %v1821 = vpop.f32.mrf.mxu0
      %v1822 = vadd.f32 0.0, %v1821
      %1823 = vmatmul.f32.gmra.mxu0 %v1700
      %v1824 = vpop.f32.mrf.mxu0
      %v1825 = vadd.f32 0.0, %v1824
      %1826 = vmatmul.f32.gmra.mxu0 %v1703
      %v1827 = vpop.f32.mrf.mxu0
      %v1828 = vadd.f32 0.0, %v1827
      %1829 = vmatmul.f32.gmra.mxu0 %v1706
      %v1830 = vpop.f32.mrf.mxu0
      %v1831 = vadd.f32 0.0, %v1830
      %1832 = vmatmul.f32.gmra.mxu0 %v1709
      %v1833 = vpop.f32.mrf.mxu0
      %v1834 = vadd.f32 0.0, %v1833
      %1835 = vmatmul.f32.gmra.mxu0 %v1712
      %v1836 = vpop.f32.mrf.mxu0
      %v1837 = vadd.f32 0.0, %v1836
      %1838 = vmatmul.f32.gmra.mxu0 %v1715
      %v1839 = vpop.f32.mrf.mxu0
      %v1840 = vadd.f32 0.0, %v1839
      %1841 = vmatmul.f32.gmra.mxu0 %v1718
      %v1842 = vpop.f32.mrf.mxu0
      %v1843 = vadd.f32 0.0, %v1842
      %1844 = vmatmul.f32.gmra.mxu0 %v1721
      %v1845 = vpop.f32.mrf.mxu0
      %v1846 = vadd.f32 0.0, %v1845
      %1847 = vmatmul.f32.gmra.mxu0 %v1724
      %v1848 = vpop.f32.mrf.mxu0
      %v1849 = vadd.f32 0.0, %v1848
      %1850 = vmatmul.f32.gmra.mxu0 %v1727
      %v1851 = vpop.f32.mrf.mxu0
      %v1852 = vadd.f32 0.0, %v1851
      %1853 = vmatmul.f32.gmra.mxu0 %v1730
      %v1854 = vpop.f32.mrf.mxu0
      %v1855 = vadd.f32 0.0, %v1854
      %1856 = vmatmul.f32.gmra.mxu0 %v1733
      %v1857 = vpop.f32.mrf.mxu0
      %v1858 = vadd.f32 0.0, %v1857
      %1859 = vmatmul.f32.gmra.mxu0 %v1736
      %v1860 = vpop.f32.mrf.mxu0
      %v1861 = vadd.f32 0.0, %v1860
      %1862 = vmatmul.f32.gmra.mxu0 %v1739
      %v1863 = vpop.f32.mrf.mxu0
      %v1864 = vadd.f32 0.0, %v1863
      %1865 = vmatmul.f32.gmra.mxu0 %v1742
      %v1866 = vpop.f32.mrf.mxu0
      %v1867 = vadd.f32 0.0, %v1866
      %1868 = vmatmul.f32.gmra.mxu0 %v1745
      %v1869 = vpop.f32.mrf.mxu0
      %v1870 = vadd.f32 0.0, %v1869
      %1871 = vmatmul.f32.gmra.mxu0 %v1748
      %v1872 = vpop.f32.mrf.mxu0
      %v1873 = vadd.f32 0.0, %v1872
      %1874 = vmatmul.f32.gmra.mxu0 %v1751
      %v1875 = vpop.f32.mrf.mxu0
      %v1876 = vadd.f32 0.0, %v1875
      %1877 = vmatmul.f32.gmra.mxu0 %v1754
      %v1878 = vpop.f32.mrf.mxu0
      %v1879 = vadd.f32 0.0, %v1878
      %1880 = vmatmul.f32.gmra.mxu0 %v1757
      %v1881 = vpop.f32.mrf.mxu0
      %v1882 = vadd.f32 0.0, %v1881
      %1883 = vmatmul.f32.gmra.mxu0 %v1760
      %v1884 = vpop.f32.mrf.mxu0
      %v1885 = vadd.f32 0.0, %v1884
      %1886 = vmatmul.f32.gmra.mxu0 %v1763
      %v1887 = vpop.f32.mrf.mxu0
      %v1888 = vadd.f32 0.0, %v1887
      %1889 = vmatmul.f32.gmra.mxu0 %v1766
      %v1890 = vpop.f32.mrf.mxu0
      %v1891 = vadd.f32 0.0, %v1890
      %1892 = vmatmul.f32.gmra.mxu0 %v1769
      %v1893 = vpop.f32.mrf.mxu0
      %v1894 = vadd.f32 0.0, %v1893
      %1895 = vmatmul.f32.gmra.mxu0 %v1772
      %v1896 = vpop.f32.mrf.mxu0
      %v1897 = vadd.f32 0.0, %v1896
      %1898 = vmatmul.f32.gmra.mxu0 %v1775
      %v1899 = vpop.f32.mrf.mxu0
      %v1900 = vadd.f32 0.0, %v1899
      %1901 = vmatmul.f32.gmra.mxu0 %v1778
      %v1902 = vpop.f32.mrf.mxu0
      %v1903 = vadd.f32 0.0, %v1902
      %1904 = vdwg.mxu0
      %v1905 = vadd.f32 %v1598, %v1798
      %v1906 = vadd.f32 %v1599, %v1801
      %v1907 = vadd.f32 %v1600, %v1804
      %v1908 = vadd.f32 %v1601, %v1807
      %v1909 = vadd.f32 %v1602, %v1810
      %v1910 = vadd.f32 %v1603, %v1813
      %v1911 = vadd.f32 %v1604, %v1816
      %v1912 = vadd.f32 %v1605, %v1819
      %v1913 = vadd.f32 %v1606, %v1822
      %v1914 = vadd.f32 %v1607, %v1825
      %v1915 = vadd.f32 %v1608, %v1828
      %v1916 = vadd.f32 %v1609, %v1831
      %v1917 = vadd.f32 %v1610, %v1834
      %v1918 = vadd.f32 %v1611, %v1837
      %v1919 = vadd.f32 %v1612, %v1840
      %v1920 = vadd.f32 %v1613, %v1843
      %v1921 = vadd.f32 %v1614, %v1846
      %v1922 = vadd.f32 %v1615, %v1849
      %v1923 = vadd.f32 %v1616, %v1852
      %v1924 = vadd.f32 %v1617, %v1855
      %v1925 = vadd.f32 %v1618, %v1858
      %v1926 = vadd.f32 %v1619, %v1861
      %v1927 = vadd.f32 %v1620, %v1864
      %v1928 = vadd.f32 %v1621, %v1867
      %v1929 = vadd.f32 %v1622, %v1870
      %v1930 = vadd.f32 %v1623, %v1873
      %v1931 = vadd.f32 %v1624, %v1876
      %v1932 = vadd.f32 %v1625, %v1879
      %v1933 = vadd.f32 %v1626, %v1882
      %v1934 = vadd.f32 %v1627, %v1885
      %v1935 = vadd.f32 %v1628, %v1888
      %v1936 = vadd.f32 %v1629, %v1891
      %v1937 = vadd.f32 %v1630, %v1894
      %v1938 = vadd.f32 %v1631, %v1897
      %v1939 = vadd.f32 %v1632, %v1900
      %v1940 = vadd.f32 %v1633, %v1903
      %v1941 = vld [vmem:[%s165 + $0x24] sm:$0xff]
      %v1942 = vld [vmem:[%s165 + $0x2c] sm:$0xff]
      %v1943 = vld [vmem:[%s165 + $0x34] sm:$0xff]
      %v1944 = vld [vmem:[%s165 + $0x3c] sm:$0xff]
      %v1945 = vld [vmem:[%s165 + $0x44] sm:$0xff]
      %v1946 = vld [vmem:[%s165 + $0x4c] sm:$0xff]
      %v1947 = vld [vmem:[%s165 + $0x54] sm:$0xff]
      %v1948 = vld [vmem:[%s165 + $0x5c] sm:$0xff]
      %v1949 = vld [vmem:[%s165 + $0x64] sm:$0xff]
      %v1950 = vld [vmem:[%s165 + $0x6c] sm:$0xff]
      %v1951 = vld [vmem:[%s165 + $0x74] sm:$0xff]
      %v1952 = vld [vmem:[%s165 + $0x7c] sm:$0xff]
      %v1953 = vld [vmem:[%s165 + $0x84] sm:$0xff]
      %v1954 = vld [vmem:[%s165 + $0x8c] sm:$0xff]
      %v1955 = vld [vmem:[%s165 + $0x94] sm:$0xff]
      %v1956 = vld [vmem:[%s165 + $0x9c] sm:$0xff]
      %v1957 = vld [vmem:[%s165 + $0xa4] sm:$0xff]
      %v1958 = vld [vmem:[%s165 + $0xac] sm:$0xff]
      %v1959 = vld [vmem:[%s165 + $0xb4] sm:$0xff]
      %v1960 = vld [vmem:[%s165 + $0xbc] sm:$0xff]
      %v1961 = vld [vmem:[%s165 + $0xc4] sm:$0xff]
      %v1962 = vld [vmem:[%s165 + $0xcc] sm:$0xff]
      %v1963 = vld [vmem:[%s165 + $0xd4] sm:$0xff]
      %v1964 = vld [vmem:[%s165 + $0xdc] sm:$0xff]
      %v1965 = vld [vmem:[%s165 + $0xe4] sm:$0xff]
      %v1966 = vld [vmem:[%s165 + $0xec] sm:$0xff]
      %v1967 = vld [vmem:[%s165 + $0xf4] sm:$0xff]
      %v1968 = vld [vmem:[%s165 + $0xfc] sm:$0xff]
      %v1969 = vld [vmem:[%s165 + $0x104] sm:$0xff]
      %v1970 = vld [vmem:[%s165 + $0x10c] sm:$0xff]
      %v1971 = vld [vmem:[%s165 + $0x114] sm:$0xff]
      %v1972 = vld [vmem:[%s165 + $0x11c] sm:$0xff]
      %v1973 = vld [vmem:[%s165 + $0x124] sm:$0xff]
      %v1974 = vld [vmem:[%s165 + $0x12c] sm:$0xff]
      %v1975 = vld [vmem:[%s165 + $0x134] sm:$0xff]
      %v1976 = vld [vmem:[%s165 + $0x13c] sm:$0xff]
      %s1977 = scalar_lea.vmem %s1, 48
      %v1978 = vld [vmem:[%s1977] sm:$0xff]
      %v1980 = vsel %vm246, %v1941, 0
      %v1983 = vsel %vm246, %v1942, 0
      %v1986 = vsel %vm246, %v1943, 0
      %v1989 = vsel %vm246, %v1944, 0
      %v1992 = vsel %vm246, %v1945, 0
      %v1995 = vsel %vm246, %v1946, 0
      %v1998 = vsel %vm246, %v1947, 0
      %v2001 = vsel %vm246, %v1948, 0
      %v2004 = vsel %vm246, %v1949, 0
      %v2007 = vsel %vm246, %v1950, 0
      %v2010 = vsel %vm246, %v1951, 0
      %v2013 = vsel %vm246, %v1952, 0
      %v2016 = vsel %vm246, %v1953, 0
      %v2019 = vsel %vm246, %v1954, 0
      %v2022 = vsel %vm246, %v1955, 0
      %v2025 = vsel %vm246, %v1956, 0
      %v2028 = vsel %vm246, %v1957, 0
      %v2031 = vsel %vm246, %v1958, 0
      %v2034 = vsel %vm246, %v1959, 0
      %v2037 = vsel %vm246, %v1960, 0
      %v2040 = vsel %vm246, %v1961, 0
      %v2043 = vsel %vm246, %v1962, 0
      %v2046 = vsel %vm246, %v1963, 0
      %v2049 = vsel %vm246, %v1964, 0
      %v2052 = vsel %vm246, %v1965, 0
      %v2055 = vsel %vm246, %v1966, 0
      %v2058 = vsel %vm246, %v1967, 0
      %v2061 = vsel %vm246, %v1968, 0
      %v2064 = vsel %vm246, %v1969, 0
      %v2067 = vsel %vm246, %v1970, 0
      %v2070 = vsel %vm246, %v1971, 0
      %v2073 = vsel %vm246, %v1972, 0
      %v2076 = vsel %vm246, %v1973, 0
      %v2079 = vsel %vm246, %v1974, 0
      %v2082 = vsel %vm246, %v1975, 0
      %v2085 = vsel %vm246, %v1976, 0
      %2087 = vmatpush.msra.mxu0 0.0
      %2088 = vmatpush.msra.mxu0 0.0
      %2089 = vmatpush.msra.mxu0 0.0
      %2090 = vmatpush.msra.mxu0 0.0
      %2091 = vmatpush.msra.mxu0 0.0
      %2092 = vmatpush.msra.mxu0 0.0
      %2093 = vmatpush.msra.mxu0 0.0
      %2094 = vmatpush.msra.mxu0 0.0
      %2095 = vmatpush.msra.mxu0 0.0
      %2096 = vmatpush.msra.mxu0 0.0
      %2097 = vmatpush.msra.mxu0 0.0
      %2098 = vmatpush.msra.mxu0 0.0
      %2099 = vmatpush.msra.mxu0 0.0
      %2100 = vmatpush.msra.mxu0 0.0
      %2101 = vmatpush.msra.mxu0 0.0
      %2102 = vmatpush.msra.mxu0 %v1978
      %2103 = vmatmul.f32.gmra.mxu0 %v1980
      %v2104 = vpop.f32.mrf.mxu0
      %v2105 = vadd.f32 0.0, %v2104
      %2106 = vmatmul.f32.gmra.mxu0 %v1983
      %v2107 = vpop.f32.mrf.mxu0
      %v2108 = vadd.f32 0.0, %v2107
      %2109 = vmatmul.f32.gmra.mxu0 %v1986
      %v2110 = vpop.f32.mrf.mxu0
      %v2111 = vadd.f32 0.0, %v2110
      %2112 = vmatmul.f32.gmra.mxu0 %v1989
      %v2113 = vpop.f32.mrf.mxu0
      %v2114 = vadd.f32 0.0, %v2113
      %2115 = vmatmul.f32.gmra.mxu0 %v1992
      %v2116 = vpop.f32.mrf.mxu0
      %v2117 = vadd.f32 0.0, %v2116
      %2118 = vmatmul.f32.gmra.mxu0 %v1995
      %v2119 = vpop.f32.mrf.mxu0
      %v2120 = vadd.f32 0.0, %v2119
      %2121 = vmatmul.f32.gmra.mxu0 %v1998
      %v2122 = vpop.f32.mrf.mxu0
      %v2123 = vadd.f32 0.0, %v2122
      %2124 = vmatmul.f32.gmra.mxu0 %v2001
      %v2125 = vpop.f32.mrf.mxu0
      %v2126 = vadd.f32 0.0, %v2125
      %2127 = vmatmul.f32.gmra.mxu0 %v2004
      %v2128 = vpop.f32.mrf.mxu0
      %v2129 = vadd.f32 0.0, %v2128
      %2130 = vmatmul.f32.gmra.mxu0 %v2007
      %v2131 = vpop.f32.mrf.mxu0
      %v2132 = vadd.f32 0.0, %v2131
      %2133 = vmatmul.f32.gmra.mxu0 %v2010
      %v2134 = vpop.f32.mrf.mxu0
      %v2135 = vadd.f32 0.0, %v2134
      %2136 = vmatmul.f32.gmra.mxu0 %v2013
      %v2137 = vpop.f32.mrf.mxu0
      %v2138 = vadd.f32 0.0, %v2137
      %2139 = vmatmul.f32.gmra.mxu0 %v2016
      %v2140 = vpop.f32.mrf.mxu0
      %v2141 = vadd.f32 0.0, %v2140
      %2142 = vmatmul.f32.gmra.mxu0 %v2019
      %v2143 = vpop.f32.mrf.mxu0
      %v2144 = vadd.f32 0.0, %v2143
      %2145 = vmatmul.f32.gmra.mxu0 %v2022
      %v2146 = vpop.f32.mrf.mxu0
      %v2147 = vadd.f32 0.0, %v2146
      %2148 = vmatmul.f32.gmra.mxu0 %v2025
      %v2149 = vpop.f32.mrf.mxu0
      %v2150 = vadd.f32 0.0, %v2149
      %2151 = vmatmul.f32.gmra.mxu0 %v2028
      %v2152 = vpop.f32.mrf.mxu0
      %v2153 = vadd.f32 0.0, %v2152
      %2154 = vmatmul.f32.gmra.mxu0 %v2031
      %v2155 = vpop.f32.mrf.mxu0
      %v2156 = vadd.f32 0.0, %v2155
      %2157 = vmatmul.f32.gmra.mxu0 %v2034
      %v2158 = vpop.f32.mrf.mxu0
      %v2159 = vadd.f32 0.0, %v2158
      %2160 = vmatmul.f32.gmra.mxu0 %v2037
      %v2161 = vpop.f32.mrf.mxu0
      %v2162 = vadd.f32 0.0, %v2161
      %2163 = vmatmul.f32.gmra.mxu0 %v2040
      %v2164 = vpop.f32.mrf.mxu0
      %v2165 = vadd.f32 0.0, %v2164
      %2166 = vmatmul.f32.gmra.mxu0 %v2043
      %v2167 = vpop.f32.mrf.mxu0
      %v2168 = vadd.f32 0.0, %v2167
      %2169 = vmatmul.f32.gmra.mxu0 %v2046
      %v2170 = vpop.f32.mrf.mxu0
      %v2171 = vadd.f32 0.0, %v2170
      %2172 = vmatmul.f32.gmra.mxu0 %v2049
      %v2173 = vpop.f32.mrf.mxu0
      %v2174 = vadd.f32 0.0, %v2173
      %2175 = vmatmul.f32.gmra.mxu0 %v2052
      %v2176 = vpop.f32.mrf.mxu0
      %v2177 = vadd.f32 0.0, %v2176
      %2178 = vmatmul.f32.gmra.mxu0 %v2055
      %v2179 = vpop.f32.mrf.mxu0
      %v2180 = vadd.f32 0.0, %v2179
      %2181 = vmatmul.f32.gmra.mxu0 %v2058
      %v2182 = vpop.f32.mrf.mxu0
      %v2183 = vadd.f32 0.0, %v2182
      %2184 = vmatmul.f32.gmra.mxu0 %v2061
      %v2185 = vpop.f32.mrf.mxu0
      %v2186 = vadd.f32 0.0, %v2185
      %2187 = vmatmul.f32.gmra.mxu0 %v2064
      %v2188 = vpop.f32.mrf.mxu0
      %v2189 = vadd.f32 0.0, %v2188
      %2190 = vmatmul.f32.gmra.mxu0 %v2067
      %v2191 = vpop.f32.mrf.mxu0
      %v2192 = vadd.f32 0.0, %v2191
      %2193 = vmatmul.f32.gmra.mxu0 %v2070
      %v2194 = vpop.f32.mrf.mxu0
      %v2195 = vadd.f32 0.0, %v2194
      %2196 = vmatmul.f32.gmra.mxu0 %v2073
      %v2197 = vpop.f32.mrf.mxu0
      %v2198 = vadd.f32 0.0, %v2197
      %2199 = vmatmul.f32.gmra.mxu0 %v2076
      %v2200 = vpop.f32.mrf.mxu0
      %v2201 = vadd.f32 0.0, %v2200
      %2202 = vmatmul.f32.gmra.mxu0 %v2079
      %v2203 = vpop.f32.mrf.mxu0
      %v2204 = vadd.f32 0.0, %v2203
      %2205 = vmatmul.f32.gmra.mxu0 %v2082
      %v2206 = vpop.f32.mrf.mxu0
      %v2207 = vadd.f32 0.0, %v2206
      %2208 = vmatmul.f32.gmra.mxu0 %v2085
      %v2209 = vpop.f32.mrf.mxu0
      %v2210 = vadd.f32 0.0, %v2209
      %2211 = vdwg.mxu0
      %v2212 = vadd.f32 %v1905, %v2105
      %v2213 = vadd.f32 %v1906, %v2108
      %v2214 = vadd.f32 %v1907, %v2111
      %v2215 = vadd.f32 %v1908, %v2114
      %v2216 = vadd.f32 %v1909, %v2117
      %v2217 = vadd.f32 %v1910, %v2120
      %v2218 = vadd.f32 %v1911, %v2123
      %v2219 = vadd.f32 %v1912, %v2126
      %v2220 = vadd.f32 %v1913, %v2129
      %v2221 = vadd.f32 %v1914, %v2132
      %v2222 = vadd.f32 %v1915, %v2135
      %v2223 = vadd.f32 %v1916, %v2138
      %v2224 = vadd.f32 %v1917, %v2141
      %v2225 = vadd.f32 %v1918, %v2144
      %v2226 = vadd.f32 %v1919, %v2147
      %v2227 = vadd.f32 %v1920, %v2150
      %v2228 = vadd.f32 %v1921, %v2153
      %v2229 = vadd.f32 %v1922, %v2156
      %v2230 = vadd.f32 %v1923, %v2159
      %v2231 = vadd.f32 %v1924, %v2162
      %v2232 = vadd.f32 %v1925, %v2165
      %v2233 = vadd.f32 %v1926, %v2168
      %v2234 = vadd.f32 %v1927, %v2171
      %v2235 = vadd.f32 %v1928, %v2174
      %v2236 = vadd.f32 %v1929, %v2177
      %v2237 = vadd.f32 %v1930, %v2180
      %v2238 = vadd.f32 %v1931, %v2183
      %v2239 = vadd.f32 %v1932, %v2186
      %v2240 = vadd.f32 %v1933, %v2189
      %v2241 = vadd.f32 %v1934, %v2192
      %v2242 = vadd.f32 %v1935, %v2195
      %v2243 = vadd.f32 %v1936, %v2198
      %v2244 = vadd.f32 %v1937, %v2201
      %v2245 = vadd.f32 %v1938, %v2204
      %v2246 = vadd.f32 %v1939, %v2207
      %v2247 = vadd.f32 %v1940, %v2210
      %v2248 = vld [vmem:[%s165 + $0x25] sm:$0xff]
      %v2249 = vld [vmem:[%s165 + $0x2d] sm:$0xff]
      %v2250 = vld [vmem:[%s165 + $0x35] sm:$0xff]
      %v2251 = vld [vmem:[%s165 + $0x3d] sm:$0xff]
      %v2252 = vld [vmem:[%s165 + $0x45] sm:$0xff]
      %v2253 = vld [vmem:[%s165 + $0x4d] sm:$0xff]
      %v2254 = vld [vmem:[%s165 + $0x55] sm:$0xff]
      %v2255 = vld [vmem:[%s165 + $0x5d] sm:$0xff]
      %v2256 = vld [vmem:[%s165 + $0x65] sm:$0xff]
      %v2257 = vld [vmem:[%s165 + $0x6d] sm:$0xff]
      %v2258 = vld [vmem:[%s165 + $0x75] sm:$0xff]
      %v2259 = vld [vmem:[%s165 + $0x7d] sm:$0xff]
      %v2260 = vld [vmem:[%s165 + $0x85] sm:$0xff]
      %v2261 = vld [vmem:[%s165 + $0x8d] sm:$0xff]
      %v2262 = vld [vmem:[%s165 + $0x95] sm:$0xff]
      %v2263 = vld [vmem:[%s165 + $0x9d] sm:$0xff]
      %v2264 = vld [vmem:[%s165 + $0xa5] sm:$0xff]
      %v2265 = vld [vmem:[%s165 + $0xad] sm:$0xff]
      %v2266 = vld [vmem:[%s165 + $0xb5] sm:$0xff]
      %v2267 = vld [vmem:[%s165 + $0xbd] sm:$0xff]
      %v2268 = vld [vmem:[%s165 + $0xc5] sm:$0xff]
      %v2269 = vld [vmem:[%s165 + $0xcd] sm:$0xff]
      %v2270 = vld [vmem:[%s165 + $0xd5] sm:$0xff]
      %v2271 = vld [vmem:[%s165 + $0xdd] sm:$0xff]
      %v2272 = vld [vmem:[%s165 + $0xe5] sm:$0xff]
      %v2273 = vld [vmem:[%s165 + $0xed] sm:$0xff]
      %v2274 = vld [vmem:[%s165 + $0xf5] sm:$0xff]
      %v2275 = vld [vmem:[%s165 + $0xfd] sm:$0xff]
      %v2276 = vld [vmem:[%s165 + $0x105] sm:$0xff]
      %v2277 = vld [vmem:[%s165 + $0x10d] sm:$0xff]
      %v2278 = vld [vmem:[%s165 + $0x115] sm:$0xff]
      %v2279 = vld [vmem:[%s165 + $0x11d] sm:$0xff]
      %v2280 = vld [vmem:[%s165 + $0x125] sm:$0xff]
      %v2281 = vld [vmem:[%s165 + $0x12d] sm:$0xff]
      %v2282 = vld [vmem:[%s165 + $0x135] sm:$0xff]
      %v2283 = vld [vmem:[%s165 + $0x13d] sm:$0xff]
      %s2284 = scalar_lea.vmem %s1, 56
      %v2285 = vld [vmem:[%s2284] sm:$0xff]
      %v2287 = vsel %vm246, %v2248, 0
      %v2290 = vsel %vm246, %v2249, 0
      %v2293 = vsel %vm246, %v2250, 0
      %v2296 = vsel %vm246, %v2251, 0
      %v2299 = vsel %vm246, %v2252, 0
      %v2302 = vsel %vm246, %v2253, 0
      %v2305 = vsel %vm246, %v2254, 0
      %v2308 = vsel %vm246, %v2255, 0
      %v2311 = vsel %vm246, %v2256, 0
      %v2314 = vsel %vm246, %v2257, 0
      %v2317 = vsel %vm246, %v2258, 0
      %v2320 = vsel %vm246, %v2259, 0
      %v2323 = vsel %vm246, %v2260, 0
      %v2326 = vsel %vm246, %v2261, 0
      %v2329 = vsel %vm246, %v2262, 0
      %v2332 = vsel %vm246, %v2263, 0
      %v2335 = vsel %vm246, %v2264, 0
      %v2338 = vsel %vm246, %v2265, 0
      %v2341 = vsel %vm246, %v2266, 0
      %v2344 = vsel %vm246, %v2267, 0
      %v2347 = vsel %vm246, %v2268, 0
      %v2350 = vsel %vm246, %v2269, 0
      %v2353 = vsel %vm246, %v2270, 0
      %v2356 = vsel %vm246, %v2271, 0
      %v2359 = vsel %vm246, %v2272, 0
      %v2362 = vsel %vm246, %v2273, 0
      %v2365 = vsel %vm246, %v2274, 0
      %v2368 = vsel %vm246, %v2275, 0
      %v2371 = vsel %vm246, %v2276, 0
      %v2374 = vsel %vm246, %v2277, 0
      %v2377 = vsel %vm246, %v2278, 0
      %v2380 = vsel %vm246, %v2279, 0
      %v2383 = vsel %vm246, %v2280, 0
      %v2386 = vsel %vm246, %v2281, 0
      %v2389 = vsel %vm246, %v2282, 0
      %v2392 = vsel %vm246, %v2283, 0
      %2394 = vmatpush.msra.mxu0 0.0
      %2395 = vmatpush.msra.mxu0 0.0
      %2396 = vmatpush.msra.mxu0 0.0
      %2397 = vmatpush.msra.mxu0 0.0
      %2398 = vmatpush.msra.mxu0 0.0
      %2399 = vmatpush.msra.mxu0 0.0
      %2400 = vmatpush.msra.mxu0 0.0
      %2401 = vmatpush.msra.mxu0 0.0
      %2402 = vmatpush.msra.mxu0 0.0
      %2403 = vmatpush.msra.mxu0 0.0
      %2404 = vmatpush.msra.mxu0 0.0
      %2405 = vmatpush.msra.mxu0 0.0
      %2406 = vmatpush.msra.mxu0 0.0
      %2407 = vmatpush.msra.mxu0 0.0
      %2408 = vmatpush.msra.mxu0 0.0
      %2409 = vmatpush.msra.mxu0 %v2285
      %2410 = vmatmul.f32.gmra.mxu0 %v2287
      %v2411 = vpop.f32.mrf.mxu0
      %v2412 = vadd.f32 0.0, %v2411
      %2413 = vmatmul.f32.gmra.mxu0 %v2290
      %v2414 = vpop.f32.mrf.mxu0
      %v2415 = vadd.f32 0.0, %v2414
      %2416 = vmatmul.f32.gmra.mxu0 %v2293
      %v2417 = vpop.f32.mrf.mxu0
      %v2418 = vadd.f32 0.0, %v2417
      %2419 = vmatmul.f32.gmra.mxu0 %v2296
      %v2420 = vpop.f32.mrf.mxu0
      %v2421 = vadd.f32 0.0, %v2420
      %2422 = vmatmul.f32.gmra.mxu0 %v2299
      %v2423 = vpop.f32.mrf.mxu0
      %v2424 = vadd.f32 0.0, %v2423
      %2425 = vmatmul.f32.gmra.mxu0 %v2302
      %v2426 = vpop.f32.mrf.mxu0
      %v2427 = vadd.f32 0.0, %v2426
      %2428 = vmatmul.f32.gmra.mxu0 %v2305
      %v2429 = vpop.f32.mrf.mxu0
      %v2430 = vadd.f32 0.0, %v2429
      %2431 = vmatmul.f32.gmra.mxu0 %v2308
      %v2432 = vpop.f32.mrf.mxu0
      %v2433 = vadd.f32 0.0, %v2432
      %2434 = vmatmul.f32.gmra.mxu0 %v2311
      %v2435 = vpop.f32.mrf.mxu0
      %v2436 = vadd.f32 0.0, %v2435
      %2437 = vmatmul.f32.gmra.mxu0 %v2314
      %v2438 = vpop.f32.mrf.mxu0
      %v2439 = vadd.f32 0.0, %v2438
      %2440 = vmatmul.f32.gmra.mxu0 %v2317
      %v2441 = vpop.f32.mrf.mxu0
      %v2442 = vadd.f32 0.0, %v2441
      %2443 = vmatmul.f32.gmra.mxu0 %v2320
      %v2444 = vpop.f32.mrf.mxu0
      %v2445 = vadd.f32 0.0, %v2444
      %2446 = vmatmul.f32.gmra.mxu0 %v2323
      %v2447 = vpop.f32.mrf.mxu0
      %v2448 = vadd.f32 0.0, %v2447
      %2449 = vmatmul.f32.gmra.mxu0 %v2326
      %v2450 = vpop.f32.mrf.mxu0
      %v2451 = vadd.f32 0.0, %v2450
      %2452 = vmatmul.f32.gmra.mxu0 %v2329
      %v2453 = vpop.f32.mrf.mxu0
      %v2454 = vadd.f32 0.0, %v2453
      %2455 = vmatmul.f32.gmra.mxu0 %v2332
      %v2456 = vpop.f32.mrf.mxu0
      %v2457 = vadd.f32 0.0, %v2456
      %2458 = vmatmul.f32.gmra.mxu0 %v2335
      %v2459 = vpop.f32.mrf.mxu0
      %v2460 = vadd.f32 0.0, %v2459
      %2461 = vmatmul.f32.gmra.mxu0 %v2338
      %v2462 = vpop.f32.mrf.mxu0
      %v2463 = vadd.f32 0.0, %v2462
      %2464 = vmatmul.f32.gmra.mxu0 %v2341
      %v2465 = vpop.f32.mrf.mxu0
      %v2466 = vadd.f32 0.0, %v2465
      %2467 = vmatmul.f32.gmra.mxu0 %v2344
      %v2468 = vpop.f32.mrf.mxu0
      %v2469 = vadd.f32 0.0, %v2468
      %2470 = vmatmul.f32.gmra.mxu0 %v2347
      %v2471 = vpop.f32.mrf.mxu0
      %v2472 = vadd.f32 0.0, %v2471
      %2473 = vmatmul.f32.gmra.mxu0 %v2350
      %v2474 = vpop.f32.mrf.mxu0
      %v2475 = vadd.f32 0.0, %v2474
      %2476 = vmatmul.f32.gmra.mxu0 %v2353
      %v2477 = vpop.f32.mrf.mxu0
      %v2478 = vadd.f32 0.0, %v2477
      %2479 = vmatmul.f32.gmra.mxu0 %v2356
      %v2480 = vpop.f32.mrf.mxu0
      %v2481 = vadd.f32 0.0, %v2480
      %2482 = vmatmul.f32.gmra.mxu0 %v2359
      %v2483 = vpop.f32.mrf.mxu0
      %v2484 = vadd.f32 0.0, %v2483
      %2485 = vmatmul.f32.gmra.mxu0 %v2362
      %v2486 = vpop.f32.mrf.mxu0
      %v2487 = vadd.f32 0.0, %v2486
      %2488 = vmatmul.f32.gmra.mxu0 %v2365
      %v2489 = vpop.f32.mrf.mxu0
      %v2490 = vadd.f32 0.0, %v2489
      %2491 = vmatmul.f32.gmra.mxu0 %v2368
      %v2492 = vpop.f32.mrf.mxu0
      %v2493 = vadd.f32 0.0, %v2492
      %2494 = vmatmul.f32.gmra.mxu0 %v2371
      %v2495 = vpop.f32.mrf.mxu0
      %v2496 = vadd.f32 0.0, %v2495
      %2497 = vmatmul.f32.gmra.mxu0 %v2374
      %v2498 = vpop.f32.mrf.mxu0
      %v2499 = vadd.f32 0.0, %v2498
      %2500 = vmatmul.f32.gmra.mxu0 %v2377
      %v2501 = vpop.f32.mrf.mxu0
      %v2502 = vadd.f32 0.0, %v2501
      %2503 = vmatmul.f32.gmra.mxu0 %v2380
      %v2504 = vpop.f32.mrf.mxu0
      %v2505 = vadd.f32 0.0, %v2504
      %2506 = vmatmul.f32.gmra.mxu0 %v2383
      %v2507 = vpop.f32.mrf.mxu0
      %v2508 = vadd.f32 0.0, %v2507
      %2509 = vmatmul.f32.gmra.mxu0 %v2386
      %v2510 = vpop.f32.mrf.mxu0
      %v2511 = vadd.f32 0.0, %v2510
      %2512 = vmatmul.f32.gmra.mxu0 %v2389
      %v2513 = vpop.f32.mrf.mxu0
      %v2514 = vadd.f32 0.0, %v2513
      %2515 = vmatmul.f32.gmra.mxu0 %v2392
      %v2516 = vpop.f32.mrf.mxu0
      %v2517 = vadd.f32 0.0, %v2516
      %2518 = vdwg.mxu0
      %v2519 = vadd.f32 %v2212, %v2412
      %v2520 = vadd.f32 %v2213, %v2415
      %v2521 = vadd.f32 %v2214, %v2418
      %v2522 = vadd.f32 %v2215, %v2421
      %v2523 = vadd.f32 %v2216, %v2424
      %v2524 = vadd.f32 %v2217, %v2427
      %v2525 = vadd.f32 %v2218, %v2430
      %v2526 = vadd.f32 %v2219, %v2433
      %v2527 = vadd.f32 %v2220, %v2436
      %v2528 = vadd.f32 %v2221, %v2439
      %v2529 = vadd.f32 %v2222, %v2442
      %v2530 = vadd.f32 %v2223, %v2445
      %v2531 = vadd.f32 %v2224, %v2448
      %v2532 = vadd.f32 %v2225, %v2451
      %v2533 = vadd.f32 %v2226, %v2454
      %v2534 = vadd.f32 %v2227, %v2457
      %v2535 = vadd.f32 %v2228, %v2460
      %v2536 = vadd.f32 %v2229, %v2463
      %v2537 = vadd.f32 %v2230, %v2466
      %v2538 = vadd.f32 %v2231, %v2469
      %v2539 = vadd.f32 %v2232, %v2472
      %v2540 = vadd.f32 %v2233, %v2475
      %v2541 = vadd.f32 %v2234, %v2478
      %v2542 = vadd.f32 %v2235, %v2481
      %v2543 = vadd.f32 %v2236, %v2484
      %v2544 = vadd.f32 %v2237, %v2487
      %v2545 = vadd.f32 %v2238, %v2490
      %v2546 = vadd.f32 %v2239, %v2493
      %v2547 = vadd.f32 %v2240, %v2496
      %v2548 = vadd.f32 %v2241, %v2499
      %v2549 = vadd.f32 %v2242, %v2502
      %v2550 = vadd.f32 %v2243, %v2505
      %v2551 = vadd.f32 %v2244, %v2508
      %v2552 = vadd.f32 %v2245, %v2511
      %v2553 = vadd.f32 %v2246, %v2514
      %v2554 = vadd.f32 %v2247, %v2517
      %v2555 = vld [vmem:[%s165 + $0x26] sm:$0xff]
      %v2556 = vld [vmem:[%s165 + $0x2e] sm:$0xff]
      %v2557 = vld [vmem:[%s165 + $0x36] sm:$0xff]
      %v2558 = vld [vmem:[%s165 + $0x3e] sm:$0xff]
      %v2559 = vld [vmem:[%s165 + $0x46] sm:$0xff]
      %v2560 = vld [vmem:[%s165 + $0x4e] sm:$0xff]
      %v2561 = vld [vmem:[%s165 + $0x56] sm:$0xff]
      %v2562 = vld [vmem:[%s165 + $0x5e] sm:$0xff]
      %v2563 = vld [vmem:[%s165 + $0x66] sm:$0xff]
      %v2564 = vld [vmem:[%s165 + $0x6e] sm:$0xff]
      %v2565 = vld [vmem:[%s165 + $0x76] sm:$0xff]
      %v2566 = vld [vmem:[%s165 + $0x7e] sm:$0xff]
      %v2567 = vld [vmem:[%s165 + $0x86] sm:$0xff]
      %v2568 = vld [vmem:[%s165 + $0x8e] sm:$0xff]
      %v2569 = vld [vmem:[%s165 + $0x96] sm:$0xff]
      %v2570 = vld [vmem:[%s165 + $0x9e] sm:$0xff]
      %v2571 = vld [vmem:[%s165 + $0xa6] sm:$0xff]
      %v2572 = vld [vmem:[%s165 + $0xae] sm:$0xff]
      %v2573 = vld [vmem:[%s165 + $0xb6] sm:$0xff]
      %v2574 = vld [vmem:[%s165 + $0xbe] sm:$0xff]
      %v2575 = vld [vmem:[%s165 + $0xc6] sm:$0xff]
      %v2576 = vld [vmem:[%s165 + $0xce] sm:$0xff]
      %v2577 = vld [vmem:[%s165 + $0xd6] sm:$0xff]
      %v2578 = vld [vmem:[%s165 + $0xde] sm:$0xff]
      %v2579 = vld [vmem:[%s165 + $0xe6] sm:$0xff]
      %v2580 = vld [vmem:[%s165 + $0xee] sm:$0xff]
      %v2581 = vld [vmem:[%s165 + $0xf6] sm:$0xff]
      %v2582 = vld [vmem:[%s165 + $0xfe] sm:$0xff]
      %v2583 = vld [vmem:[%s165 + $0x106] sm:$0xff]
      %v2584 = vld [vmem:[%s165 + $0x10e] sm:$0xff]
      %v2585 = vld [vmem:[%s165 + $0x116] sm:$0xff]
      %v2586 = vld [vmem:[%s165 + $0x11e] sm:$0xff]
      %v2587 = vld [vmem:[%s165 + $0x126] sm:$0xff]
      %v2588 = vld [vmem:[%s165 + $0x12e] sm:$0xff]
      %v2589 = vld [vmem:[%s165 + $0x136] sm:$0xff]
      %v2590 = vld [vmem:[%s165 + $0x13e] sm:$0xff]
      %s2591 = scalar_lea.vmem %s1, 64
      %v2592 = vld [vmem:[%s2591] sm:$0xff]
      %v2594 = vsel %vm246, %v2555, 0
      %v2597 = vsel %vm246, %v2556, 0
      %v2600 = vsel %vm246, %v2557, 0
      %v2603 = vsel %vm246, %v2558, 0
      %v2606 = vsel %vm246, %v2559, 0
      %v2609 = vsel %vm246, %v2560, 0
      %v2612 = vsel %vm246, %v2561, 0
      %v2615 = vsel %vm246, %v2562, 0
      %v2618 = vsel %vm246, %v2563, 0
      %v2621 = vsel %vm246, %v2564, 0
      %v2624 = vsel %vm246, %v2565, 0
      %v2627 = vsel %vm246, %v2566, 0
      %v2630 = vsel %vm246, %v2567, 0
      %v2633 = vsel %vm246, %v2568, 0
      %v2636 = vsel %vm246, %v2569, 0
      %v2639 = vsel %vm246, %v2570, 0
      %v2642 = vsel %vm246, %v2571, 0
      %v2645 = vsel %vm246, %v2572, 0
      %v2648 = vsel %vm246, %v2573, 0
      %v2651 = vsel %vm246, %v2574, 0
      %v2654 = vsel %vm246, %v2575, 0
      %v2657 = vsel %vm246, %v2576, 0
      %v2660 = vsel %vm246, %v2577, 0
      %v2663 = vsel %vm246, %v2578, 0
      %v2666 = vsel %vm246, %v2579, 0
      %v2669 = vsel %vm246, %v2580, 0
      %v2672 = vsel %vm246, %v2581, 0
      %v2675 = vsel %vm246, %v2582, 0
      %v2678 = vsel %vm246, %v2583, 0
      %v2681 = vsel %vm246, %v2584, 0
      %v2684 = vsel %vm246, %v2585, 0
      %v2687 = vsel %vm246, %v2586, 0
      %v2690 = vsel %vm246, %v2587, 0
      %v2693 = vsel %vm246, %v2588, 0
      %v2696 = vsel %vm246, %v2589, 0
      %v2699 = vsel %vm246, %v2590, 0
      %2701 = vmatpush.msra.mxu0 0.0
      %2702 = vmatpush.msra.mxu0 0.0
      %2703 = vmatpush.msra.mxu0 0.0
      %2704 = vmatpush.msra.mxu0 0.0
      %2705 = vmatpush.msra.mxu0 0.0
      %2706 = vmatpush.msra.mxu0 0.0
      %2707 = vmatpush.msra.mxu0 0.0
      %2708 = vmatpush.msra.mxu0 0.0
      %2709 = vmatpush.msra.mxu0 0.0
      %2710 = vmatpush.msra.mxu0 0.0
      %2711 = vmatpush.msra.mxu0 0.0
      %2712 = vmatpush.msra.mxu0 0.0
      %2713 = vmatpush.msra.mxu0 0.0
      %2714 = vmatpush.msra.mxu0 0.0
      %2715 = vmatpush.msra.mxu0 0.0
      %2716 = vmatpush.msra.mxu0 %v2592
      %2717 = vmatmul.f32.gmra.mxu0 %v2594
      %v2718 = vpop.f32.mrf.mxu0
      %v2719 = vadd.f32 0.0, %v2718
      %2720 = vmatmul.f32.gmra.mxu0 %v2597
      %v2721 = vpop.f32.mrf.mxu0
      %v2722 = vadd.f32 0.0, %v2721
      %2723 = vmatmul.f32.gmra.mxu0 %v2600
      %v2724 = vpop.f32.mrf.mxu0
      %v2725 = vadd.f32 0.0, %v2724
      %2726 = vmatmul.f32.gmra.mxu0 %v2603
      %v2727 = vpop.f32.mrf.mxu0
      %v2728 = vadd.f32 0.0, %v2727
      %2729 = vmatmul.f32.gmra.mxu0 %v2606
      %v2730 = vpop.f32.mrf.mxu0
      %v2731 = vadd.f32 0.0, %v2730
      %2732 = vmatmul.f32.gmra.mxu0 %v2609
      %v2733 = vpop.f32.mrf.mxu0
      %v2734 = vadd.f32 0.0, %v2733
      %2735 = vmatmul.f32.gmra.mxu0 %v2612
      %v2736 = vpop.f32.mrf.mxu0
      %v2737 = vadd.f32 0.0, %v2736
      %2738 = vmatmul.f32.gmra.mxu0 %v2615
      %v2739 = vpop.f32.mrf.mxu0
      %v2740 = vadd.f32 0.0, %v2739
      %2741 = vmatmul.f32.gmra.mxu0 %v2618
      %v2742 = vpop.f32.mrf.mxu0
      %v2743 = vadd.f32 0.0, %v2742
      %2744 = vmatmul.f32.gmra.mxu0 %v2621
      %v2745 = vpop.f32.mrf.mxu0
      %v2746 = vadd.f32 0.0, %v2745
      %2747 = vmatmul.f32.gmra.mxu0 %v2624
      %v2748 = vpop.f32.mrf.mxu0
      %v2749 = vadd.f32 0.0, %v2748
      %2750 = vmatmul.f32.gmra.mxu0 %v2627
      %v2751 = vpop.f32.mrf.mxu0
      %v2752 = vadd.f32 0.0, %v2751
      %2753 = vmatmul.f32.gmra.mxu0 %v2630
      %v2754 = vpop.f32.mrf.mxu0
      %v2755 = vadd.f32 0.0, %v2754
      %2756 = vmatmul.f32.gmra.mxu0 %v2633
      %v2757 = vpop.f32.mrf.mxu0
      %v2758 = vadd.f32 0.0, %v2757
      %2759 = vmatmul.f32.gmra.mxu0 %v2636
      %v2760 = vpop.f32.mrf.mxu0
      %v2761 = vadd.f32 0.0, %v2760
      %2762 = vmatmul.f32.gmra.mxu0 %v2639
      %v2763 = vpop.f32.mrf.mxu0
      %v2764 = vadd.f32 0.0, %v2763
      %2765 = vmatmul.f32.gmra.mxu0 %v2642
      %v2766 = vpop.f32.mrf.mxu0
      %v2767 = vadd.f32 0.0, %v2766
      %2768 = vmatmul.f32.gmra.mxu0 %v2645
      %v2769 = vpop.f32.mrf.mxu0
      %v2770 = vadd.f32 0.0, %v2769
      %2771 = vmatmul.f32.gmra.mxu0 %v2648
      %v2772 = vpop.f32.mrf.mxu0
      %v2773 = vadd.f32 0.0, %v2772
      %2774 = vmatmul.f32.gmra.mxu0 %v2651
      %v2775 = vpop.f32.mrf.mxu0
      %v2776 = vadd.f32 0.0, %v2775
      %2777 = vmatmul.f32.gmra.mxu0 %v2654
      %v2778 = vpop.f32.mrf.mxu0
      %v2779 = vadd.f32 0.0, %v2778
      %2780 = vmatmul.f32.gmra.mxu0 %v2657
      %v2781 = vpop.f32.mrf.mxu0
      %v2782 = vadd.f32 0.0, %v2781
      %2783 = vmatmul.f32.gmra.mxu0 %v2660
      %v2784 = vpop.f32.mrf.mxu0
      %v2785 = vadd.f32 0.0, %v2784
      %2786 = vmatmul.f32.gmra.mxu0 %v2663
      %v2787 = vpop.f32.mrf.mxu0
      %v2788 = vadd.f32 0.0, %v2787
      %2789 = vmatmul.f32.gmra.mxu0 %v2666
      %v2790 = vpop.f32.mrf.mxu0
      %v2791 = vadd.f32 0.0, %v2790
      %2792 = vmatmul.f32.gmra.mxu0 %v2669
      %v2793 = vpop.f32.mrf.mxu0
      %v2794 = vadd.f32 0.0, %v2793
      %2795 = vmatmul.f32.gmra.mxu0 %v2672
      %v2796 = vpop.f32.mrf.mxu0
      %v2797 = vadd.f32 0.0, %v2796
      %2798 = vmatmul.f32.gmra.mxu0 %v2675
      %v2799 = vpop.f32.mrf.mxu0
      %v2800 = vadd.f32 0.0, %v2799
      %2801 = vmatmul.f32.gmra.mxu0 %v2678
      %v2802 = vpop.f32.mrf.mxu0
      %v2803 = vadd.f32 0.0, %v2802
      %2804 = vmatmul.f32.gmra.mxu0 %v2681
      %v2805 = vpop.f32.mrf.mxu0
      %v2806 = vadd.f32 0.0, %v2805
      %2807 = vmatmul.f32.gmra.mxu0 %v2684
      %v2808 = vpop.f32.mrf.mxu0
      %v2809 = vadd.f32 0.0, %v2808
      %2810 = vmatmul.f32.gmra.mxu0 %v2687
      %v2811 = vpop.f32.mrf.mxu0
      %v2812 = vadd.f32 0.0, %v2811
      %2813 = vmatmul.f32.gmra.mxu0 %v2690
      %v2814 = vpop.f32.mrf.mxu0
      %v2815 = vadd.f32 0.0, %v2814
      %2816 = vmatmul.f32.gmra.mxu0 %v2693
      %v2817 = vpop.f32.mrf.mxu0
      %v2818 = vadd.f32 0.0, %v2817
      %2819 = vmatmul.f32.gmra.mxu0 %v2696
      %v2820 = vpop.f32.mrf.mxu0
      %v2821 = vadd.f32 0.0, %v2820
      %2822 = vmatmul.f32.gmra.mxu0 %v2699
      %v2823 = vpop.f32.mrf.mxu0
      %v2824 = vadd.f32 0.0, %v2823
      %2825 = vdwg.mxu0
      %v2826 = vadd.f32 %v2519, %v2719
      %v2827 = vadd.f32 %v2520, %v2722
      %v2828 = vadd.f32 %v2521, %v2725
      %v2829 = vadd.f32 %v2522, %v2728
      %v2830 = vadd.f32 %v2523, %v2731
      %v2831 = vadd.f32 %v2524, %v2734
      %v2832 = vadd.f32 %v2525, %v2737
      %v2833 = vadd.f32 %v2526, %v2740
      %v2834 = vadd.f32 %v2527, %v2743
      %v2835 = vadd.f32 %v2528, %v2746
      %v2836 = vadd.f32 %v2529, %v2749
      %v2837 = vadd.f32 %v2530, %v2752
      %v2838 = vadd.f32 %v2531, %v2755
      %v2839 = vadd.f32 %v2532, %v2758
      %v2840 = vadd.f32 %v2533, %v2761
      %v2841 = vadd.f32 %v2534, %v2764
      %v2842 = vadd.f32 %v2535, %v2767
      %v2843 = vadd.f32 %v2536, %v2770
      %v2844 = vadd.f32 %v2537, %v2773
      %v2845 = vadd.f32 %v2538, %v2776
      %v2846 = vadd.f32 %v2539, %v2779
      %v2847 = vadd.f32 %v2540, %v2782
      %v2848 = vadd.f32 %v2541, %v2785
      %v2849 = vadd.f32 %v2542, %v2788
      %v2850 = vadd.f32 %v2543, %v2791
      %v2851 = vadd.f32 %v2544, %v2794
      %v2852 = vadd.f32 %v2545, %v2797
      %v2853 = vadd.f32 %v2546, %v2800
      %v2854 = vadd.f32 %v2547, %v2803
      %v2855 = vadd.f32 %v2548, %v2806
      %v2856 = vadd.f32 %v2549, %v2809
      %v2857 = vadd.f32 %v2550, %v2812
      %v2858 = vadd.f32 %v2551, %v2815
      %v2859 = vadd.f32 %v2552, %v2818
      %v2860 = vadd.f32 %v2553, %v2821
      %v2861 = vadd.f32 %v2554, %v2824
      %v2862 = vld [vmem:[%s2] sm:$0x1]
      %v2864 = vperm.slane %v2862, 0
      %v2866 = vadd.f32 %v2826, %v2864
      %v2867 = vadd.f32 %v2827, %v2864
      %v2868 = vadd.f32 %v2828, %v2864
      %v2869 = vadd.f32 %v2829, %v2864
      %v2870 = vadd.f32 %v2830, %v2864
      %v2871 = vadd.f32 %v2831, %v2864
      %v2872 = vadd.f32 %v2832, %v2864
      %v2873 = vadd.f32 %v2833, %v2864
      %v2874 = vadd.f32 %v2834, %v2864
      %v2875 = vadd.f32 %v2835, %v2864
      %v2876 = vadd.f32 %v2836, %v2864
      %v2877 = vadd.f32 %v2837, %v2864
      %v2878 = vadd.f32 %v2838, %v2864
      %v2879 = vadd.f32 %v2839, %v2864
      %v2880 = vadd.f32 %v2840, %v2864
      %v2881 = vadd.f32 %v2841, %v2864
      %v2882 = vadd.f32 %v2842, %v2864
      %v2883 = vadd.f32 %v2843, %v2864
      %v2884 = vadd.f32 %v2844, %v2864
      %v2885 = vadd.f32 %v2845, %v2864
      %v2886 = vadd.f32 %v2846, %v2864
      %v2887 = vadd.f32 %v2847, %v2864
      %v2888 = vadd.f32 %v2848, %v2864
      %v2889 = vadd.f32 %v2849, %v2864
      %v2890 = vadd.f32 %v2850, %v2864
      %v2891 = vadd.f32 %v2851, %v2864
      %v2892 = vadd.f32 %v2852, %v2864
      %v2893 = vadd.f32 %v2853, %v2864
      %v2894 = vadd.f32 %v2854, %v2864
      %v2895 = vadd.f32 %v2855, %v2864
      %v2896 = vadd.f32 %v2856, %v2864
      %v2897 = vadd.f32 %v2857, %v2864
      %v2898 = vadd.f32 %v2858, %v2864
      %v2899 = vadd.f32 %v2859, %v2864
      %v2900 = vadd.f32 %v2860, %v2864
      %v2901 = vadd.f32 %v2861, %v2864
      %v2902 = vmax.f32 %v2866, 0.0
      %v2903 = vmax.f32 %v2867, 0.0
      %v2904 = vmax.f32 %v2868, 0.0
      %v2905 = vmax.f32 %v2869, 0.0
      %v2906 = vmax.f32 %v2870, 0.0
      %v2907 = vmax.f32 %v2871, 0.0
      %v2908 = vmax.f32 %v2872, 0.0
      %v2909 = vmax.f32 %v2873, 0.0
      %v2910 = vmax.f32 %v2874, 0.0
      %v2911 = vmax.f32 %v2875, 0.0
      %v2912 = vmax.f32 %v2876, 0.0
      %v2913 = vmax.f32 %v2877, 0.0
      %v2914 = vmax.f32 %v2878, 0.0
      %v2915 = vmax.f32 %v2879, 0.0
      %v2916 = vmax.f32 %v2880, 0.0
      %v2917 = vmax.f32 %v2881, 0.0
      %v2918 = vmax.f32 %v2882, 0.0
      %v2919 = vmax.f32 %v2883, 0.0
      %v2920 = vmax.f32 %v2884, 0.0
      %v2921 = vmax.f32 %v2885, 0.0
      %v2922 = vmax.f32 %v2886, 0.0
      %v2923 = vmax.f32 %v2887, 0.0
      %v2924 = vmax.f32 %v2888, 0.0
      %v2925 = vmax.f32 %v2889, 0.0
      %v2926 = vmax.f32 %v2890, 0.0
      %v2927 = vmax.f32 %v2891, 0.0
      %v2928 = vmax.f32 %v2892, 0.0
      %v2929 = vmax.f32 %v2893, 0.0
      %v2930 = vmax.f32 %v2894, 0.0
      %v2931 = vmax.f32 %v2895, 0.0
      %v2932 = vmax.f32 %v2896, 0.0
      %v2933 = vmax.f32 %v2897, 0.0
      %v2934 = vmax.f32 %v2898, 0.0
      %v2935 = vmax.f32 %v2899, 0.0
      %v2936 = vmax.f32 %v2900, 0.0
      %v2937 = vmax.f32 %v2901, 0.0
      %vm2938 = vcmask 130048
      %2939 = vst.msk [vmem:[%s170] sm:$0xff] %vm2938, %v2902
      %2940 = vst.msk [vmem:[%s170 + $0x8] sm:$0xff] %vm2938, %v2903
      %2941 = vst.msk [vmem:[%s170 + $0x10] sm:$0xff] %vm2938, %v2904
      %2942 = vst.msk [vmem:[%s170 + $0x18] sm:$0xff] %vm2938, %v2905
      %2943 = vst.msk [vmem:[%s170 + $0x20] sm:$0xff] %vm2938, %v2906
      %2944 = vst.msk [vmem:[%s170 + $0x28] sm:$0xff] %vm2938, %v2907
      %2945 = vst.msk [vmem:[%s170 + $0x30] sm:$0xff] %vm2938, %v2908
      %2946 = vst.msk [vmem:[%s170 + $0x38] sm:$0xff] %vm2938, %v2909
      %2947 = vst.msk [vmem:[%s170 + $0x40] sm:$0xff] %vm2938, %v2910
      %2948 = vst.msk [vmem:[%s170 + $0x48] sm:$0xff] %vm2938, %v2911
      %2949 = vst.msk [vmem:[%s170 + $0x50] sm:$0xff] %vm2938, %v2912
      %2950 = vst.msk [vmem:[%s170 + $0x58] sm:$0xff] %vm2938, %v2913
      %2951 = vst.msk [vmem:[%s170 + $0x60] sm:$0xff] %vm2938, %v2914
      %2952 = vst.msk [vmem:[%s170 + $0x68] sm:$0xff] %vm2938, %v2915
      %2953 = vst.msk [vmem:[%s170 + $0x70] sm:$0xff] %vm2938, %v2916
      %2954 = vst.msk [vmem:[%s170 + $0x78] sm:$0xff] %vm2938, %v2917
      %2955 = vst.msk [vmem:[%s170 + $0x80] sm:$0xff] %vm2938, %v2918
      %2956 = vst.msk [vmem:[%s170 + $0x88] sm:$0xff] %vm2938, %v2919
      %2957 = vst.msk [vmem:[%s170 + $0x90] sm:$0xff] %vm2938, %v2920
      %2958 = vst.msk [vmem:[%s170 + $0x98] sm:$0xff] %vm2938, %v2921
      %2959 = vst.msk [vmem:[%s170 + $0xa0] sm:$0xff] %vm2938, %v2922
      %2960 = vst.msk [vmem:[%s170 + $0xa8] sm:$0xff] %vm2938, %v2923
      %2961 = vst.msk [vmem:[%s170 + $0xb0] sm:$0xff] %vm2938, %v2924
      %2962 = vst.msk [vmem:[%s170 + $0xb8] sm:$0xff] %vm2938, %v2925
      %2963 = vst.msk [vmem:[%s170 + $0xc0] sm:$0xff] %vm2938, %v2926
      %2964 = vst.msk [vmem:[%s170 + $0xc8] sm:$0xff] %vm2938, %v2927
      %2965 = vst.msk [vmem:[%s170 + $0xd0] sm:$0xff] %vm2938, %v2928
      %2966 = vst.msk [vmem:[%s170 + $0xd8] sm:$0xff] %vm2938, %v2929
      %2967 = vst.msk [vmem:[%s170 + $0xe0] sm:$0xff] %vm2938, %v2930
      %2968 = vst.msk [vmem:[%s170 + $0xe8] sm:$0xff] %vm2938, %v2931
      %2969 = vst.msk [vmem:[%s170 + $0xf0] sm:$0xff] %vm2938, %v2932
      %2970 = vst.msk [vmem:[%s170 + $0xf8] sm:$0xff] %vm2938, %v2933
      %2971 = vst.msk [vmem:[%s170 + $0x100] sm:$0xff] %vm2938, %v2934
      %2972 = vst.msk [vmem:[%s170 + $0x108] sm:$0xff] %vm2938, %v2935
      %2973 = vst.msk [vmem:[%s170 + $0x110] sm:$0xff] %vm2938, %v2936
      %2974 = vst.msk [vmem:[%s170 + $0x118] sm:$0xff] %vm2938, %v2937
      %p2975 = scmp.lt.s32.totalorder %s14, 1
      %s2976 = scalar_select %p2975, %s14, 1
      %s2977 = smul.addr %s2976, 36
      %s2978 = smul.addr %s2977, 8
      %s2979 = scalar_lea.vmem %s3, %s2978
      // Predicated region
      $region33: #{_lambda_.1} parent=31 // pred_check
        %p2980 = pneg %p100
      $region34: #{_lambda_.1} parent=31 // pred_check_branch
        %2982 = sbr.rel (%p2980) target = $region36
      $region35: #{_lambda_.1} parent=31 // pred_region
        _
      $region36: #{_lambda_.1} parent=31 // pred_fallthru
        _
    $region32: #{_lambda_.1} parent=5 // pred_fallthru
      _
    %p2983 = scmp.le.s32.totalorder 2, %s9
    // Predicated region
    $region37: #{_lambda_.1} parent=5 // pred_check
      %p2984 = pneg %p2983
    $region38: #{_lambda_.1} parent=5 // pred_check_branch
      %2986 = sbr.rel (%p2984) target = $region40
    $region39: #{_lambda_.1} parent=5 // pred_region
      %s2987 = ssub.s32 %s9, 2
      // Predicated region
      $region41: #{_lambda_.1} parent=39 // pred_check
        %p2988 = pneg %p106
      $region42: #{_lambda_.1} parent=39 // pred_check_branch
        %2990 = sbr.rel (%p2988) target = $region44
      $region43: #{_lambda_.1} parent=39 // pred_region
        %p2991 = scmp.lt.s32.totalorder %s15, 1
        %s2992 = scalar_select %p2991, %s15, 1
        %s2993 = smul.addr %s2992, 36
        %s2994 = smul.addr %s2993, 8
        %s2995 = scalar_lea.vmem %s3, %s2994
      $region44: #{_lambda_.1} parent=39 // pred_fallthru
        _
    $region40: #{_lambda_.1} parent=5 // pred_fallthru
      _
  $region6: #{_lambda_.1} parent=0 // loop_footer
    %s13 = sadd.s32 1, %s9
  $region7: #{_lambda_.1} parent=0 // loop_footer_branch
    %8 = sbr.rel target = $region3
  $region8: #{_lambda_.1} parent=0 // loop_exit
    _

</llo_original>
